<compile_context>
chip_gen: v7x
topology: tpu7x:2x2x1
jax: 0.10.0
libtpu: 0.0.40
codegen_flags: <defaults>
</compile_context>

<pallas_src>
import jax
import jax.numpy as jnp
from jax.experimental import pallas as pl
from jax.experimental.pallas import tpu as pltpu  # noqa: F401  (TPU backend)


def _make_net_kernel(num_layers, S, Bp, H):
    G = 4 * H

    def kernel(*refs):
        x_ref = refs[0]                                    # (S*Bp, D) time-major
        wih0_ref, whh0_ref, b0_ref = refs[1], refs[2], refs[3]
        idx = 4
        upper_refs = []                                    # (W_stacked, b) per layer>=1
        for _ in range(1, num_layers):
            upper_refs.append((refs[idx], refs[idx + 1]))
            idx += 2
        fcw_ref = refs[idx]                                # (H, O)
        fcb_ref = refs[idx + 1]                            # (1, O)
        out_ref = refs[idx + 2]                            # (Bp, O)

        # Lane-band mask: lanes [2H, 3H) are the "g" gate (tanh); i/f/o use
        # sigmoid.  One whole-vreg sigmoid pass + tanh(x) = 2*sigmoid(2x) - 1.
        lane = jax.lax.broadcasted_iota(jnp.int32, (Bp, G), 1)
        is_g = jnp.logical_and(lane >= 2 * H, lane < 3 * H)

        def cell(gates, c):
            act = jax.nn.sigmoid(jnp.where(is_g, 2.0 * gates, gates))
            act = jnp.where(is_g, 2.0 * act - 1.0, act)
            i = act[:, 0 * H:1 * H]
            f = act[:, 1 * H:2 * H]
            g = act[:, 2 * H:3 * H]
            o = act[:, 3 * H:4 * H]
            c_new = f * c + i * g
            h_new = o * (2.0 * jax.nn.sigmoid(2.0 * c_new) - 1.0)   # tanh(c_new)
            return h_new, c_new

        # Hoist all weight/bias reads out of the unrolled recurrence.
        whh0 = whh0_ref[...]                               # (H, 4H)
        b0 = b0_ref[...]                                   # (1, 4H)
        upper = [(w[...], b[...]) for (w, b) in upper_refs]  # (2H,4H), (1,4H)

        # Layer-0 hoisted input projection (+ folded bias): one big matmul.
        xp = jnp.dot(x_ref[...], wih0_ref[...],
                     preferred_element_type=jnp.float32) + b0     # (S*Bp, 4H)

        zeros = jnp.zeros((Bp, H), jnp.float32)
        h = [zeros] * num_layers
        c = [zeros] * num_layers

        # Fully unrolled (layer, time) wavefront: layer-l step t depends on
        # layer-(l-1) step t and layer-l step t-1 only.
        for t in range(S):
            gates0 = xp[t * Bp:(t + 1) * Bp, :] + jnp.dot(
                h[0], whh0, preferred_element_type=jnp.float32)
            h[0], c[0] = cell(gates0, c[0])
            for l in range(1, num_layers):
                w_stk, b_l = upper[l - 1]
                inp = jnp.concatenate([h[l - 1], h[l]], axis=-1)   # (Bp, 2H)
                gates = jnp.dot(inp, w_stk,
                                preferred_element_type=jnp.float32) + b_l
                h[l], c[l] = cell(gates, c[l])

        # FC head on the last time step of the top layer (== lstm_out[:, -1]).
        out_ref[...] = (jnp.dot(h[num_layers - 1], fcw_ref[...],
                                preferred_element_type=jnp.float32)
                        + fcb_ref[...]).astype(out_ref.dtype)

    return kernel


def net_forward(x, params):
    """x: (batch, seq_len, input_dim) -> (batch, output_dim)."""
    x = x.astype(jnp.float32)
    B, S, D = x.shape
    Bp = max(8, ((B + 7) // 8) * 8)                        # pad batch to sublane tile

    lstm = params["lstm"]
    num_layers = len(lstm)
    H = lstm[0][1].shape[1]                                # w_hh: (4H, H)
    G = 4 * H
    O = params["fc_w"].shape[0]

    # Time-major, batch padded to Bp, flattened to (S*Bp, D).
    x_tm = jnp.transpose(x, (1, 0, 2))                     # (S, B, D)
    x_tm = jnp.pad(x_tm, ((0, 0), (0, Bp - B), (0, 0))).reshape(S * Bp, D)

    args = [x_tm]
    # Layer 0: separate W_ih^T / W_hh^T (input projection is hoisted).
    w_ih0, w_hh0, b_ih0, b_hh0 = lstm[0]
    args.append(jnp.asarray(w_ih0.T, jnp.float32))         # (D, 4H) lane-dense
    args.append(jnp.asarray(w_hh0.T, jnp.float32))         # (H, 4H)
    args.append((b_ih0 + b_hh0).reshape(1, G).astype(jnp.float32))
    # Layers >= 1: stacked [[W_ih^T],[W_hh^T]] for per-step fused matmul.
    for (w_ih, w_hh, b_ih, b_hh) in lstm[1:]:
        w_stacked = jnp.concatenate(
            [jnp.asarray(w_ih.T, jnp.float32),             # (H, 4H)
             jnp.asarray(w_hh.T, jnp.float32)], axis=0)    # -> (2H, 4H)
        args.append(w_stacked)
        args.append((b_ih + b_hh).reshape(1, G).astype(jnp.float32))
    args.append(jnp.asarray(params["fc_w"].T, jnp.float32))    # (H, O)
    args.append(params["fc_b"].reshape(1, O).astype(jnp.float32))

    kernel = _make_net_kernel(num_layers, S, Bp, H)
    out = pl.pallas_call(
        kernel,
        out_shape=jax.ShapeDtypeStruct((Bp, O), jnp.float32),
    )(*args)
    return out[:B]                                         # drop padded rows


# ---------------- pure-JAX reference for correctness check ----------------
def net_ref(x, params):
    def layer(xs, w_ih, w_hh, b_ih, b_hh):
        B = xs.shape[0]
        H = w_hh.shape[1]

        def step(carry, x_t):
            h, c = carry
            gates = x_t @ w_ih.T + h @ w_hh.T + b_ih + b_hh
            i, f, g, o = jnp.split(gates, 4, axis=-1)
            c = jax.nn.sigmoid(f) * c + jax.nn.sigmoid(i) * jnp.tanh(g)
            h = jax.nn.sigmoid(o) * jnp.tanh(c)
            return (h, c), h

        h0 = jnp.zeros((B, H), jnp.float32)
        c0 = jnp.zeros((B, H), jnp.float32)
        _, hs = jax.lax.scan(step, (h0, c0), jnp.transpose(xs, (1, 0, 2)))
        return jnp.transpose(hs, (1, 0, 2))

    out = x
    for (w_ih, w_hh, b_ih, b_hh) in params["lstm"]:
        out = layer(out, w_ih, w_hh, b_ih, b_hh)
    return out[:, -1] @ params["fc_w"].T + params["fc_b"]


if __name__ == "__main__":
    input_dim, hidden_dim, seq_len, output_dim, layers = 8, 32, 8, 4, 2
    batch = 2

    key = jax.random.PRNGKey(0)
    keys = jax.random.split(key, 4 * layers + 3)
    scale = 1.0 / float(jnp.sqrt(hidden_dim))

    ki = 0
    lstm_params = []
    for l in range(layers):
        in_d = input_dim if l == 0 else hidden_dim
        w_ih = jax.random.uniform(keys[ki], (4 * hidden_dim, in_d),
                                  minval=-scale, maxval=scale); ki += 1
        w_hh = jax.random.uniform(keys[ki], (4 * hidden_dim, hidden_dim),
                                  minval=-scale, maxval=scale); ki += 1
        b_ih = jax.random.uniform(keys[ki], (4 * hidden_dim,),
                                  minval=-scale, maxval=scale); ki += 1
        b_hh = jax.random.uniform(keys[ki], (4 * hidden_dim,),
                                  minval=-scale, maxval=scale); ki += 1
        lstm_params.append((w_ih, w_hh, b_ih, b_hh))
    fc_w = jax.random.uniform(keys[ki], (output_dim, hidden_dim),
                              minval=-scale, maxval=scale); ki += 1
    fc_b = jax.random.uniform(keys[ki], (output_dim,),
                              minval=-scale, maxval=scale); ki += 1
    params = {"lstm": lstm_params, "fc_w": fc_w, "fc_b": fc_b}

    x = jax.random.normal(keys[ki], (batch, seq_len, input_dim),
                          dtype=jnp.float32)

    out = jax.block_until_ready(net_forward(x, params))
    ref = net_ref(x, params)

    assert out.shape == (batch, output_dim), out.shape
    assert jnp.allclose(out, ref, atol=1e-4, rtol=1e-4), (out, ref)
    print("KERNEL_OK")
</pallas_src>

<mosaic_0001>
module attributes {stable_mosaic.version = 11 : i64} {
  func.func @kernel(%arg0: memref<64x8xf32, #tpu.memory_space<vmem>>, %arg1: memref<8x128xf32, #tpu.memory_space<vmem>>, %arg2: memref<32x128xf32, #tpu.memory_space<vmem>>, %arg3: memref<1x128xf32, #tpu.memory_space<vmem>>, %arg4: memref<64x128xf32, #tpu.memory_space<vmem>>, %arg5: memref<1x128xf32, #tpu.memory_space<vmem>>, %arg6: memref<32x4xf32, #tpu.memory_space<vmem>>, %arg7: memref<1x4xf32, #tpu.memory_space<vmem>>, %arg8: memref<8x4xf32, #tpu.memory_space<vmem>>) attributes {dimension_semantics = [], scalar_prefetch = 0 : i64, scratch_operands = 0 : i64, tpu.core_type = #tpu.core_type<tc>} {
    %0 = tpu.iota {dimensions = array<i32: 1>} : vector<8x128xi32>
    %c64_i32 = arith.constant 64 : i32
    %1 = vector.broadcast %c64_i32 : i32 to vector<8x128xi32>
    %2 = arith.cmpi sge, %0, %1 : vector<8x128xi32>
    %c96_i32 = arith.constant 96 : i32
    %3 = vector.broadcast %c96_i32 : i32 to vector<8x128xi32>
    %4 = arith.cmpi slt, %0, %3 : vector<8x128xi32>
    %5 = arith.andi %2, %4 : vector<8x128xi1>
    %c0 = arith.constant 0 : index
    %c0_0 = arith.constant 0 : index
    %6 = vector.load %arg2[%c0, %c0_0] : memref<32x128xf32, #tpu.memory_space<vmem>>, vector<32x128xf32>
    %c0_1 = arith.constant 0 : index
    %c0_2 = arith.constant 0 : index
    %7 = vector.load %arg3[%c0_1, %c0_2] : memref<1x128xf32, #tpu.memory_space<vmem>>, vector<1x128xf32>
    %c0_3 = arith.constant 0 : index
    %c0_4 = arith.constant 0 : index
    %8 = vector.load %arg4[%c0_3, %c0_4] : memref<64x128xf32, #tpu.memory_space<vmem>>, vector<64x128xf32>
    %c0_5 = arith.constant 0 : index
    %c0_6 = arith.constant 0 : index
    %9 = vector.load %arg5[%c0_5, %c0_6] : memref<1x128xf32, #tpu.memory_space<vmem>>, vector<1x128xf32>
    %c0_7 = arith.constant 0 : index
    %c0_8 = arith.constant 0 : index
    %10 = vector.load %arg0[%c0_7, %c0_8] : memref<64x8xf32, #tpu.memory_space<vmem>>, vector<64x8xf32>
    %c0_9 = arith.constant 0 : index
    %c0_10 = arith.constant 0 : index
    %11 = vector.load %arg1[%c0_9, %c0_10] : memref<8x128xf32, #tpu.memory_space<vmem>>, vector<8x128xf32>
    %cst = arith.constant dense<0.000000e+00> : vector<64x128xf32>
    %12 = tpu.matmul %10, %11, %cst {dimension_numbers = #tpu.dot_dimension_numbers<[1], [0], [0], [1], [0, 0, 1, 1], [], []>} : vector<64x8xf32>, vector<8x128xf32>, vector<64x128xf32> -> vector<64x128xf32>
    %13 = vector.broadcast %7 : vector<1x128xf32> to vector<64x128xf32>
    %14 = arith.addf %12, %13 : vector<64x128xf32>
    %cst_11 = arith.constant 0.000000e+00 : f32
    %15 = vector.broadcast %cst_11 : f32 to vector<8x32xf32>
    %16 = vector.extract_strided_slice %14 {offsets = [0, 0], sizes = [8, 128], strides = [1, 1]} : vector<64x128xf32> to vector<8x128xf32>
    %cst_12 = arith.constant dense<0.000000e+00> : vector<8x128xf32>
    %17 = tpu.matmul %15, %6, %cst_12 {dimension_numbers = #tpu.dot_dimension_numbers<[1], [0], [0], [1], [0, 0, 1, 1], [], []>} : vector<8x32xf32>, vector<32x128xf32>, vector<8x128xf32> -> vector<8x128xf32>
    %18 = arith.addf %16, %17 : vector<8x128xf32>
    %cst_13 = arith.constant 2.000000e+00 : f32
    %19 = vector.broadcast %cst_13 : f32 to vector<8x128xf32>
    %20 = arith.mulf %19, %18 : vector<8x128xf32>
    %21 = arith.select %5, %20, %18 : vector<8x128xi1>, vector<8x128xf32>
    %22 = arith.negf %21 : vector<8x128xf32>
    %23 = math.exp %22 : vector<8x128xf32>
    %cst_14 = arith.constant 1.000000e+00 : f32
    %24 = vector.broadcast %cst_14 : f32 to vector<8x128xf32>
    %25 = arith.addf %24, %23 : vector<8x128xf32>
    %26 = arith.divf %24, %25 : vector<8x128xf32>
    %cst_15 = arith.constant 2.000000e+00 : f32
    %27 = vector.broadcast %cst_15 : f32 to vector<8x128xf32>
    %28 = arith.mulf %27, %26 : vector<8x128xf32>
    %cst_16 = arith.constant 1.000000e+00 : f32
    %29 = vector.broadcast %cst_16 : f32 to vector<8x128xf32>
    %30 = arith.subf %28, %29 : vector<8x128xf32>
    %31 = arith.select %5, %30, %26 : vector<8x128xi1>, vector<8x128xf32>
    %32 = vector.extract_strided_slice %31 {offsets = [0, 0], sizes = [8, 32], strides = [1, 1]} : vector<8x128xf32> to vector<8x32xf32>
    %33 = vector.extract_strided_slice %31 {offsets = [0, 32], sizes = [8, 32], strides = [1, 1]} : vector<8x128xf32> to vector<8x32xf32>
    %34 = vector.extract_strided_slice %31 {offsets = [0, 64], sizes = [8, 32], strides = [1, 1]} : vector<8x128xf32> to vector<8x32xf32>
    %35 = vector.extract_strided_slice %31 {offsets = [0, 96], sizes = [8, 32], strides = [1, 1]} : vector<8x128xf32> to vector<8x32xf32>
    %36 = arith.mulf %33, %15 : vector<8x32xf32>
    %37 = arith.mulf %32, %34 : vector<8x32xf32>
    %38 = arith.addf %36, %37 : vector<8x32xf32>
    %cst_17 = arith.constant 2.000000e+00 : f32
    %39 = vector.broadcast %cst_17 : f32 to vector<8x32xf32>
    %40 = arith.mulf %39, %38 : vector<8x32xf32>
    %41 = arith.negf %40 : vector<8x32xf32>
    %42 = math.exp %41 : vector<8x32xf32>
    %cst_18 = arith.constant 1.000000e+00 : f32
    %43 = vector.broadcast %cst_18 : f32 to vector<8x32xf32>
    %44 = arith.addf %43, %42 : vector<8x32xf32>
    %45 = arith.divf %43, %44 : vector<8x32xf32>
    %cst_19 = arith.constant 2.000000e+00 : f32
    %46 = vector.broadcast %cst_19 : f32 to vector<8x32xf32>
    %47 = arith.mulf %46, %45 : vector<8x32xf32>
    %cst_20 = arith.constant 1.000000e+00 : f32
    %48 = vector.broadcast %cst_20 : f32 to vector<8x32xf32>
    %49 = arith.subf %47, %48 : vector<8x32xf32>
    %50 = arith.mulf %35, %49 : vector<8x32xf32>
    %51 = tpu.concatenate %50, %15 in 1 : vector<8x32xf32>, vector<8x32xf32> -> vector<8x64xf32>
    %cst_21 = arith.constant dense<0.000000e+00> : vector<8x128xf32>
    %52 = tpu.matmul %51, %8, %cst_21 {dimension_numbers = #tpu.dot_dimension_numbers<[1], [0], [0], [1], [0, 0, 1, 1], [], []>} : vector<8x64xf32>, vector<64x128xf32>, vector<8x128xf32> -> vector<8x128xf32>
    %53 = vector.broadcast %9 : vector<1x128xf32> to vector<8x128xf32>
    %54 = arith.addf %52, %53 : vector<8x128xf32>
    %cst_22 = arith.constant 2.000000e+00 : f32
    %55 = vector.broadcast %cst_22 : f32 to vector<8x128xf32>
    %56 = arith.mulf %55, %54 : vector<8x128xf32>
    %57 = arith.select %5, %56, %54 : vector<8x128xi1>, vector<8x128xf32>
    %58 = arith.negf %57 : vector<8x128xf32>
    %59 = math.exp %58 : vector<8x128xf32>
    %cst_23 = arith.constant 1.000000e+00 : f32
    %60 = vector.broadcast %cst_23 : f32 to vector<8x128xf32>
    %61 = arith.addf %60, %59 : vector<8x128xf32>
    %62 = arith.divf %60, %61 : vector<8x128xf32>
    %cst_24 = arith.constant 2.000000e+00 : f32
    %63 = vector.broadcast %cst_24 : f32 to vector<8x128xf32>
    %64 = arith.mulf %63, %62 : vector<8x128xf32>
    %cst_25 = arith.constant 1.000000e+00 : f32
    %65 = vector.broadcast %cst_25 : f32 to vector<8x128xf32>
    %66 = arith.subf %64, %65 : vector<8x128xf32>
    %67 = arith.select %5, %66, %62 : vector<8x128xi1>, vector<8x128xf32>
    %68 = vector.extract_strided_slice %67 {offsets = [0, 0], sizes = [8, 32], strides = [1, 1]} : vector<8x128xf32> to vector<8x32xf32>
    %69 = vector.extract_strided_slice %67 {offsets = [0, 32], sizes = [8, 32], strides = [1, 1]} : vector<8x128xf32> to vector<8x32xf32>
    %70 = vector.extract_strided_slice %67 {offsets = [0, 64], sizes = [8, 32], strides = [1, 1]} : vector<8x128xf32> to vector<8x32xf32>
    %71 = vector.extract_strided_slice %67 {offsets = [0, 96], sizes = [8, 32], strides = [1, 1]} : vector<8x128xf32> to vector<8x32xf32>
    %72 = arith.mulf %69, %15 : vector<8x32xf32>
    %73 = arith.mulf %68, %70 : vector<8x32xf32>
    %74 = arith.addf %72, %73 : vector<8x32xf32>
    %cst_26 = arith.constant 2.000000e+00 : f32
    %75 = vector.broadcast %cst_26 : f32 to vector<8x32xf32>
    %76 = arith.mulf %75, %74 : vector<8x32xf32>
    %77 = arith.negf %76 : vector<8x32xf32>
    %78 = math.exp %77 : vector<8x32xf32>
    %cst_27 = arith.constant 1.000000e+00 : f32
    %79 = vector.broadcast %cst_27 : f32 to vector<8x32xf32>
    %80 = arith.addf %79, %78 : vector<8x32xf32>
    %81 = arith.divf %79, %80 : vector<8x32xf32>
    %cst_28 = arith.constant 2.000000e+00 : f32
    %82 = vector.broadcast %cst_28 : f32 to vector<8x32xf32>
    %83 = arith.mulf %82, %81 : vector<8x32xf32>
    %cst_29 = arith.constant 1.000000e+00 : f32
    %84 = vector.broadcast %cst_29 : f32 to vector<8x32xf32>
    %85 = arith.subf %83, %84 : vector<8x32xf32>
    %86 = arith.mulf %71, %85 : vector<8x32xf32>
    %87 = vector.extract_strided_slice %14 {offsets = [8, 0], sizes = [8, 128], strides = [1, 1]} : vector<64x128xf32> to vector<8x128xf32>
    %cst_30 = arith.constant dense<0.000000e+00> : vector<8x128xf32>
    %88 = tpu.matmul %50, %6, %cst_30 {dimension_numbers = #tpu.dot_dimension_numbers<[1], [0], [0], [1], [0, 0, 1, 1], [], []>} : vector<8x32xf32>, vector<32x128xf32>, vector<8x128xf32> -> vector<8x128xf32>
    %89 = arith.addf %87, %88 : vector<8x128xf32>
    %cst_31 = arith.constant 2.000000e+00 : f32
    %90 = vector.broadcast %cst_31 : f32 to vector<8x128xf32>
    %91 = arith.mulf %90, %89 : vector<8x128xf32>
    %92 = arith.select %5, %91, %89 : vector<8x128xi1>, vector<8x128xf32>
    %93 = arith.negf %92 : vector<8x128xf32>
    %94 = math.exp %93 : vector<8x128xf32>
    %cst_32 = arith.constant 1.000000e+00 : f32
    %95 = vector.broadcast %cst_32 : f32 to vector<8x128xf32>
    %96 = arith.addf %95, %94 : vector<8x128xf32>
    %97 = arith.divf %95, %96 : vector<8x128xf32>
    %cst_33 = arith.constant 2.000000e+00 : f32
    %98 = vector.broadcast %cst_33 : f32 to vector<8x128xf32>
    %99 = arith.mulf %98, %97 : vector<8x128xf32>
    %cst_34 = arith.constant 1.000000e+00 : f32
    %100 = vector.broadcast %cst_34 : f32 to vector<8x128xf32>
    %101 = arith.subf %99, %100 : vector<8x128xf32>
    %102 = arith.select %5, %101, %97 : vector<8x128xi1>, vector<8x128xf32>
    %103 = vector.extract_strided_slice %102 {offsets = [0, 0], sizes = [8, 32], strides = [1, 1]} : vector<8x128xf32> to vector<8x32xf32>
    %104 = vector.extract_strided_slice %102 {offsets = [0, 32], sizes = [8, 32], strides = [1, 1]} : vector<8x128xf32> to vector<8x32xf32>
    %105 = vector.extract_strided_slice %102 {offsets = [0, 64], sizes = [8, 32], strides = [1, 1]} : vector<8x128xf32> to vector<8x32xf32>
    %106 = vector.extract_strided_slice %102 {offsets = [0, 96], sizes = [8, 32], strides = [1, 1]} : vector<8x128xf32> to vector<8x32xf32>
    %107 = arith.mulf %104, %38 : vector<8x32xf32>
    %108 = arith.mulf %103, %105 : vector<8x32xf32>
    %109 = arith.addf %107, %108 : vector<8x32xf32>
    %cst_35 = arith.constant 2.000000e+00 : f32
    %110 = vector.broadcast %cst_35 : f32 to vector<8x32xf32>
    %111 = arith.mulf %110, %109 : vector<8x32xf32>
    %112 = arith.negf %111 : vector<8x32xf32>
    %113 = math.exp %112 : vector<8x32xf32>
    %cst_36 = arith.constant 1.000000e+00 : f32
    %114 = vector.broadcast %cst_36 : f32 to vector<8x32xf32>
    %115 = arith.addf %114, %113 : vector<8x32xf32>
    %116 = arith.divf %114, %115 : vector<8x32xf32>
    %cst_37 = arith.constant 2.000000e+00 : f32
    %117 = vector.broadcast %cst_37 : f32 to vector<8x32xf32>
    %118 = arith.mulf %117, %116 : vector<8x32xf32>
    %cst_38 = arith.constant 1.000000e+00 : f32
    %119 = vector.broadcast %cst_38 : f32 to vector<8x32xf32>
    %120 = arith.subf %118, %119 : vector<8x32xf32>
    %121 = arith.mulf %106, %120 : vector<8x32xf32>
    %122 = tpu.concatenate %121, %86 in 1 : vector<8x32xf32>, vector<8x32xf32> -> vector<8x64xf32>
    %cst_39 = arith.constant dense<0.000000e+00> : vector<8x128xf32>
    %123 = tpu.matmul %122, %8, %cst_39 {dimension_numbers = #tpu.dot_dimension_numbers<[1], [0], [0], [1], [0, 0, 1, 1], [], []>} : vector<8x64xf32>, vector<64x128xf32>, vector<8x128xf32> -> vector<8x128xf32>
    %124 = vector.broadcast %9 : vector<1x128xf32> to vector<8x128xf32>
    %125 = arith.addf %123, %124 : vector<8x128xf32>
    %cst_40 = arith.constant 2.000000e+00 : f32
    %126 = vector.broadcast %cst_40 : f32 to vector<8x128xf32>
    %127 = arith.mulf %126, %125 : vector<8x128xf32>
    %128 = arith.select %5, %127, %125 : vector<8x128xi1>, vector<8x128xf32>
    %129 = arith.negf %128 : vector<8x128xf32>
    %130 = math.exp %129 : vector<8x128xf32>
    %cst_41 = arith.constant 1.000000e+00 : f32
    %131 = vector.broadcast %cst_41 : f32 to vector<8x128xf32>
    %132 = arith.addf %131, %130 : vector<8x128xf32>
    %133 = arith.divf %131, %132 : vector<8x128xf32>
    %cst_42 = arith.constant 2.000000e+00 : f32
    %134 = vector.broadcast %cst_42 : f32 to vector<8x128xf32>
    %135 = arith.mulf %134, %133 : vector<8x128xf32>
    %cst_43 = arith.constant 1.000000e+00 : f32
    %136 = vector.broadcast %cst_43 : f32 to vector<8x128xf32>
    %137 = arith.subf %135, %136 : vector<8x128xf32>
    %138 = arith.select %5, %137, %133 : vector<8x128xi1>, vector<8x128xf32>
    %139 = vector.extract_strided_slice %138 {offsets = [0, 0], sizes = [8, 32], strides = [1, 1]} : vector<8x128xf32> to vector<8x32xf32>
    %140 = vector.extract_strided_slice %138 {offsets = [0, 32], sizes = [8, 32], strides = [1, 1]} : vector<8x128xf32> to vector<8x32xf32>
    %141 = vector.extract_strided_slice %138 {offsets = [0, 64], sizes = [8, 32], strides = [1, 1]} : vector<8x128xf32> to vector<8x32xf32>
    %142 = vector.extract_strided_slice %138 {offsets = [0, 96], sizes = [8, 32], strides = [1, 1]} : vector<8x128xf32> to vector<8x32xf32>
    %143 = arith.mulf %140, %74 : vector<8x32xf32>
    %144 = arith.mulf %139, %141 : vector<8x32xf32>
    %145 = arith.addf %143, %144 : vector<8x32xf32>
    %cst_44 = arith.constant 2.000000e+00 : f32
    %146 = vector.broadcast %cst_44 : f32 to vector<8x32xf32>
    %147 = arith.mulf %146, %145 : vector<8x32xf32>
    %148 = arith.negf %147 : vector<8x32xf32>
    %149 = math.exp %148 : vector<8x32xf32>
    %cst_45 = arith.constant 1.000000e+00 : f32
    %150 = vector.broadcast %cst_45 : f32 to vector<8x32xf32>
    %151 = arith.addf %150, %149 : vector<8x32xf32>
    %152 = arith.divf %150, %151 : vector<8x32xf32>
    %cst_46 = arith.constant 2.000000e+00 : f32
    %153 = vector.broadcast %cst_46 : f32 to vector<8x32xf32>
    %154 = arith.mulf %153, %152 : vector<8x32xf32>
    %cst_47 = arith.constant 1.000000e+00 : f32
    %155 = vector.broadcast %cst_47 : f32 to vector<8x32xf32>
    %156 = arith.subf %154, %155 : vector<8x32xf32>
    %157 = arith.mulf %142, %156 : vector<8x32xf32>
    %158 = vector.extract_strided_slice %14 {offsets = [16, 0], sizes = [8, 128], strides = [1, 1]} : vector<64x128xf32> to vector<8x128xf32>
    %cst_48 = arith.constant dense<0.000000e+00> : vector<8x128xf32>
    %159 = tpu.matmul %121, %6, %cst_48 {dimension_numbers = #tpu.dot_dimension_numbers<[1], [0], [0], [1], [0, 0, 1, 1], [], []>} : vector<8x32xf32>, vector<32x128xf32>, vector<8x128xf32> -> vector<8x128xf32>
    %160 = arith.addf %158, %159 : vector<8x128xf32>
    %cst_49 = arith.constant 2.000000e+00 : f32
    %161 = vector.broadcast %cst_49 : f32 to vector<8x128xf32>
    %162 = arith.mulf %161, %160 : vector<8x128xf32>
    %163 = arith.select %5, %162, %160 : vector<8x128xi1>, vector<8x128xf32>
    %164 = arith.negf %163 : vector<8x128xf32>
    %165 = math.exp %164 : vector<8x128xf32>
    %cst_50 = arith.constant 1.000000e+00 : f32
    %166 = vector.broadcast %cst_50 : f32 to vector<8x128xf32>
    %167 = arith.addf %166, %165 : vector<8x128xf32>
    %168 = arith.divf %166, %167 : vector<8x128xf32>
    %cst_51 = arith.constant 2.000000e+00 : f32
    %169 = vector.broadcast %cst_51 : f32 to vector<8x128xf32>
    %170 = arith.mulf %169, %168 : vector<8x128xf32>
    %cst_52 = arith.constant 1.000000e+00 : f32
    %171 = vector.broadcast %cst_52 : f32 to vector<8x128xf32>
    %172 = arith.subf %170, %171 : vector<8x128xf32>
    %173 = arith.select %5, %172, %168 : vector<8x128xi1>, vector<8x128xf32>
    %174 = vector.extract_strided_slice %173 {offsets = [0, 0], sizes = [8, 32], strides = [1, 1]} : vector<8x128xf32> to vector<8x32xf32>
    %175 = vector.extract_strided_slice %173 {offsets = [0, 32], sizes = [8, 32], strides = [1, 1]} : vector<8x128xf32> to vector<8x32xf32>
    %176 = vector.extract_strided_slice %173 {offsets = [0, 64], sizes = [8, 32], strides = [1, 1]} : vector<8x128xf32> to vector<8x32xf32>
    %177 = vector.extract_strided_slice %173 {offsets = [0, 96], sizes = [8, 32], strides = [1, 1]} : vector<8x128xf32> to vector<8x32xf32>
    %178 = arith.mulf %175, %109 : vector<8x32xf32>
    %179 = arith.mulf %174, %176 : vector<8x32xf32>
    %180 = arith.addf %178, %179 : vector<8x32xf32>
    %cst_53 = arith.constant 2.000000e+00 : f32
    %181 = vector.broadcast %cst_53 : f32 to vector<8x32xf32>
    %182 = arith.mulf %181, %180 : vector<8x32xf32>
    %183 = arith.negf %182 : vector<8x32xf32>
    %184 = math.exp %183 : vector<8x32xf32>
    %cst_54 = arith.constant 1.000000e+00 : f32
    %185 = vector.broadcast %cst_54 : f32 to vector<8x32xf32>
    %186 = arith.addf %185, %184 : vector<8x32xf32>
    %187 = arith.divf %185, %186 : vector<8x32xf32>
    %cst_55 = arith.constant 2.000000e+00 : f32
    %188 = vector.broadcast %cst_55 : f32 to vector<8x32xf32>
    %189 = arith.mulf %188, %187 : vector<8x32xf32>
    %cst_56 = arith.constant 1.000000e+00 : f32
    %190 = vector.broadcast %cst_56 : f32 to vector<8x32xf32>
    %191 = arith.subf %189, %190 : vector<8x32xf32>
    %192 = arith.mulf %177, %191 : vector<8x32xf32>
    %193 = tpu.concatenate %192, %157 in 1 : vector<8x32xf32>, vector<8x32xf32> -> vector<8x64xf32>
    %cst_57 = arith.constant dense<0.000000e+00> : vector<8x128xf32>
    %194 = tpu.matmul %193, %8, %cst_57 {dimension_numbers = #tpu.dot_dimension_numbers<[1], [0], [0], [1], [0, 0, 1, 1], [], []>} : vector<8x64xf32>, vector<64x128xf32>, vector<8x128xf32> -> vector<8x128xf32>
    %195 = vector.broadcast %9 : vector<1x128xf32> to vector<8x128xf32>
    %196 = arith.addf %194, %195 : vector<8x128xf32>
    %cst_58 = arith.constant 2.000000e+00 : f32
    %197 = vector.broadcast %cst_58 : f32 to vector<8x128xf32>
    %198 = arith.mulf %197, %196 : vector<8x128xf32>
    %199 = arith.select %5, %198, %196 : vector<8x128xi1>, vector<8x128xf32>
    %200 = arith.negf %199 : vector<8x128xf32>
    %201 = math.exp %200 : vector<8x128xf32>
    %cst_59 = arith.constant 1.000000e+00 : f32
    %202 = vector.broadcast %cst_59 : f32 to vector<8x128xf32>
    %203 = arith.addf %202, %201 : vector<8x128xf32>
    %204 = arith.divf %202, %203 : vector<8x128xf32>
    %cst_60 = arith.constant 2.000000e+00 : f32
    %205 = vector.broadcast %cst_60 : f32 to vector<8x128xf32>
    %206 = arith.mulf %205, %204 : vector<8x128xf32>
    %cst_61 = arith.constant 1.000000e+00 : f32
    %207 = vector.broadcast %cst_61 : f32 to vector<8x128xf32>
    %208 = arith.subf %206, %207 : vector<8x128xf32>
    %209 = arith.select %5, %208, %204 : vector<8x128xi1>, vector<8x128xf32>
    %210 = vector.extract_strided_slice %209 {offsets = [0, 0], sizes = [8, 32], strides = [1, 1]} : vector<8x128xf32> to vector<8x32xf32>
    %211 = vector.extract_strided_slice %209 {offsets = [0, 32], sizes = [8, 32], strides = [1, 1]} : vector<8x128xf32> to vector<8x32xf32>
    %212 = vector.extract_strided_slice %209 {offsets = [0, 64], sizes = [8, 32], strides = [1, 1]} : vector<8x128xf32> to vector<8x32xf32>
    %213 = vector.extract_strided_slice %209 {offsets = [0, 96], sizes = [8, 32], strides = [1, 1]} : vector<8x128xf32> to vector<8x32xf32>
    %214 = arith.mulf %211, %145 : vector<8x32xf32>
    %215 = arith.mulf %210, %212 : vector<8x32xf32>
    %216 = arith.addf %214, %215 : vector<8x32xf32>
    %cst_62 = arith.constant 2.000000e+00 : f32
    %217 = vector.broadcast %cst_62 : f32 to vector<8x32xf32>
    %218 = arith.mulf %217, %216 : vector<8x32xf32>
    %219 = arith.negf %218 : vector<8x32xf32>
    %220 = math.exp %219 : vector<8x32xf32>
    %cst_63 = arith.constant 1.000000e+00 : f32
    %221 = vector.broadcast %cst_63 : f32 to vector<8x32xf32>
    %222 = arith.addf %221, %220 : vector<8x32xf32>
    %223 = arith.divf %221, %222 : vector<8x32xf32>
    %cst_64 = arith.constant 2.000000e+00 : f32
    %224 = vector.broadcast %cst_64 : f32 to vector<8x32xf32>
    %225 = arith.mulf %224, %223 : vector<8x32xf32>
    %cst_65 = arith.constant 1.000000e+00 : f32
    %226 = vector.broadcast %cst_65 : f32 to vector<8x32xf32>
    %227 = arith.subf %225, %226 : vector<8x32xf32>
    %228 = arith.mulf %213, %227 : vector<8x32xf32>
    %229 = vector.extract_strided_slice %14 {offsets = [24, 0], sizes = [8, 128], strides = [1, 1]} : vector<64x128xf32> to vector<8x128xf32>
    %cst_66 = arith.constant dense<0.000000e+00> : vector<8x128xf32>
    %230 = tpu.matmul %192, %6, %cst_66 {dimension_numbers = #tpu.dot_dimension_numbers<[1], [0], [0], [1], [0, 0, 1, 1], [], []>} : vector<8x32xf32>, vector<32x128xf32>, vector<8x128xf32> -> vector<8x128xf32>
    %231 = arith.addf %229, %230 : vector<8x128xf32>
    %cst_67 = arith.constant 2.000000e+00 : f32
    %232 = vector.broadcast %cst_67 : f32 to vector<8x128xf32>
    %233 = arith.mulf %232, %231 : vector<8x128xf32>
    %234 = arith.select %5, %233, %231 : vector<8x128xi1>, vector<8x128xf32>
    %235 = arith.negf %234 : vector<8x128xf32>
    %236 = math.exp %235 : vector<8x128xf32>
    %cst_68 = arith.constant 1.000000e+00 : f32
    %237 = vector.broadcast %cst_68 : f32 to vector<8x128xf32>
    %238 = arith.addf %237, %236 : vector<8x128xf32>
    %239 = arith.divf %237, %238 : vector<8x128xf32>
    %cst_69 = arith.constant 2.000000e+00 : f32
    %240 = vector.broadcast %cst_69 : f32 to vector<8x128xf32>
    %241 = arith.mulf %240, %239 : vector<8x128xf32>
    %cst_70 = arith.constant 1.000000e+00 : f32
    %242 = vector.broadcast %cst_70 : f32 to vector<8x128xf32>
    %243 = arith.subf %241, %242 : vector<8x128xf32>
    %244 = arith.select %5, %243, %239 : vector<8x128xi1>, vector<8x128xf32>
    %245 = vector.extract_strided_slice %244 {offsets = [0, 0], sizes = [8, 32], strides = [1, 1]} : vector<8x128xf32> to vector<8x32xf32>
    %246 = vector.extract_strided_slice %244 {offsets = [0, 32], sizes = [8, 32], strides = [1, 1]} : vector<8x128xf32> to vector<8x32xf32>
    %247 = vector.extract_strided_slice %244 {offsets = [0, 64], sizes = [8, 32], strides = [1, 1]} : vector<8x128xf32> to vector<8x32xf32>
    %248 = vector.extract_strided_slice %244 {offsets = [0, 96], sizes = [8, 32], strides = [1, 1]} : vector<8x128xf32> to vector<8x32xf32>
    %249 = arith.mulf %246, %180 : vector<8x32xf32>
    %250 = arith.mulf %245, %247 : vector<8x32xf32>
    %251 = arith.addf %249, %250 : vector<8x32xf32>
    %cst_71 = arith.constant 2.000000e+00 : f32
    %252 = vector.broadcast %cst_71 : f32 to vector<8x32xf32>
    %253 = arith.mulf %252, %251 : vector<8x32xf32>
    %254 = arith.negf %253 : vector<8x32xf32>
    %255 = math.exp %254 : vector<8x32xf32>
    %cst_72 = arith.constant 1.000000e+00 : f32
    %256 = vector.broadcast %cst_72 : f32 to vector<8x32xf32>
    %257 = arith.addf %256, %255 : vector<8x32xf32>
    %258 = arith.divf %256, %257 : vector<8x32xf32>
    %cst_73 = arith.constant 2.000000e+00 : f32
    %259 = vector.broadcast %cst_73 : f32 to vector<8x32xf32>
    %260 = arith.mulf %259, %258 : vector<8x32xf32>
    %cst_74 = arith.constant 1.000000e+00 : f32
    %261 = vector.broadcast %cst_74 : f32 to vector<8x32xf32>
    %262 = arith.subf %260, %261 : vector<8x32xf32>
    %263 = arith.mulf %248, %262 : vector<8x32xf32>
    %264 = tpu.concatenate %263, %228 in 1 : vector<8x32xf32>, vector<8x32xf32> -> vector<8x64xf32>
    %cst_75 = arith.constant dense<0.000000e+00> : vector<8x128xf32>
    %265 = tpu.matmul %264, %8, %cst_75 {dimension_numbers = #tpu.dot_dimension_numbers<[1], [0], [0], [1], [0, 0, 1, 1], [], []>} : vector<8x64xf32>, vector<64x128xf32>, vector<8x128xf32> -> vector<8x128xf32>
    %266 = vector.broadcast %9 : vector<1x128xf32> to vector<8x128xf32>
    %267 = arith.addf %265, %266 : vector<8x128xf32>
    %cst_76 = arith.constant 2.000000e+00 : f32
    %268 = vector.broadcast %cst_76 : f32 to vector<8x128xf32>
    %269 = arith.mulf %268, %267 : vector<8x128xf32>
    %270 = arith.select %5, %269, %267 : vector<8x128xi1>, vector<8x128xf32>
    %271 = arith.negf %270 : vector<8x128xf32>
    %272 = math.exp %271 : vector<8x128xf32>
    %cst_77 = arith.constant 1.000000e+00 : f32
    %273 = vector.broadcast %cst_77 : f32 to vector<8x128xf32>
    %274 = arith.addf %273, %272 : vector<8x128xf32>
    %275 = arith.divf %273, %274 : vector<8x128xf32>
    %cst_78 = arith.constant 2.000000e+00 : f32
    %276 = vector.broadcast %cst_78 : f32 to vector<8x128xf32>
    %277 = arith.mulf %276, %275 : vector<8x128xf32>
    %cst_79 = arith.constant 1.000000e+00 : f32
    %278 = vector.broadcast %cst_79 : f32 to vector<8x128xf32>
    %279 = arith.subf %277, %278 : vector<8x128xf32>
    %280 = arith.select %5, %279, %275 : vector<8x128xi1>, vector<8x128xf32>
    %281 = vector.extract_strided_slice %280 {offsets = [0, 0], sizes = [8, 32], strides = [1, 1]} : vector<8x128xf32> to vector<8x32xf32>
    %282 = vector.extract_strided_slice %280 {offsets = [0, 32], sizes = [8, 32], strides = [1, 1]} : vector<8x128xf32> to vector<8x32xf32>
    %283 = vector.extract_strided_slice %280 {offsets = [0, 64], sizes = [8, 32], strides = [1, 1]} : vector<8x128xf32> to vector<8x32xf32>
    %284 = vector.extract_strided_slice %280 {offsets = [0, 96], sizes = [8, 32], strides = [1, 1]} : vector<8x128xf32> to vector<8x32xf32>
    %285 = arith.mulf %282, %216 : vector<8x32xf32>
    %286 = arith.mulf %281, %283 : vector<8x32xf32>
    %287 = arith.addf %285, %286 : vector<8x32xf32>
    %cst_80 = arith.constant 2.000000e+00 : f32
    %288 = vector.broadcast %cst_80 : f32 to vector<8x32xf32>
    %289 = arith.mulf %288, %287 : vector<8x32xf32>
    %290 = arith.negf %289 : vector<8x32xf32>
    %291 = math.exp %290 : vector<8x32xf32>
    %cst_81 = arith.constant 1.000000e+00 : f32
    %292 = vector.broadcast %cst_81 : f32 to vector<8x32xf32>
    %293 = arith.addf %292, %291 : vector<8x32xf32>
    %294 = arith.divf %292, %293 : vector<8x32xf32>
    %cst_82 = arith.constant 2.000000e+00 : f32
    %295 = vector.broadcast %cst_82 : f32 to vector<8x32xf32>
    %296 = arith.mulf %295, %294 : vector<8x32xf32>
    %cst_83 = arith.constant 1.000000e+00 : f32
    %297 = vector.broadcast %cst_83 : f32 to vector<8x32xf32>
    %298 = arith.subf %296, %297 : vector<8x32xf32>
    %299 = arith.mulf %284, %298 : vector<8x32xf32>
    %300 = vector.extract_strided_slice %14 {offsets = [32, 0], sizes = [8, 128], strides = [1, 1]} : vector<64x128xf32> to vector<8x128xf32>
    %cst_84 = arith.constant dense<0.000000e+00> : vector<8x128xf32>
    %301 = tpu.matmul %263, %6, %cst_84 {dimension_numbers = #tpu.dot_dimension_numbers<[1], [0], [0], [1], [0, 0, 1, 1], [], []>} : vector<8x32xf32>, vector<32x128xf32>, vector<8x128xf32> -> vector<8x128xf32>
    %302 = arith.addf %300, %301 : vector<8x128xf32>
    %cst_85 = arith.constant 2.000000e+00 : f32
    %303 = vector.broadcast %cst_85 : f32 to vector<8x128xf32>
    %304 = arith.mulf %303, %302 : vector<8x128xf32>
    %305 = arith.select %5, %304, %302 : vector<8x128xi1>, vector<8x128xf32>
    %306 = arith.negf %305 : vector<8x128xf32>
    %307 = math.exp %306 : vector<8x128xf32>
    %cst_86 = arith.constant 1.000000e+00 : f32
    %308 = vector.broadcast %cst_86 : f32 to vector<8x128xf32>
    %309 = arith.addf %308, %307 : vector<8x128xf32>
    %310 = arith.divf %308, %309 : vector<8x128xf32>
    %cst_87 = arith.constant 2.000000e+00 : f32
    %311 = vector.broadcast %cst_87 : f32 to vector<8x128xf32>
    %312 = arith.mulf %311, %310 : vector<8x128xf32>
    %cst_88 = arith.constant 1.000000e+00 : f32
    %313 = vector.broadcast %cst_88 : f32 to vector<8x128xf32>
    %314 = arith.subf %312, %313 : vector<8x128xf32>
    %315 = arith.select %5, %314, %310 : vector<8x128xi1>, vector<8x128xf32>
    %316 = vector.extract_strided_slice %315 {offsets = [0, 0], sizes = [8, 32], strides = [1, 1]} : vector<8x128xf32> to vector<8x32xf32>
    %317 = vector.extract_strided_slice %315 {offsets = [0, 32], sizes = [8, 32], strides = [1, 1]} : vector<8x128xf32> to vector<8x32xf32>
    %318 = vector.extract_strided_slice %315 {offsets = [0, 64], sizes = [8, 32], strides = [1, 1]} : vector<8x128xf32> to vector<8x32xf32>
    %319 = vector.extract_strided_slice %315 {offsets = [0, 96], sizes = [8, 32], strides = [1, 1]} : vector<8x128xf32> to vector<8x32xf32>
    %320 = arith.mulf %317, %251 : vector<8x32xf32>
    %321 = arith.mulf %316, %318 : vector<8x32xf32>
    %322 = arith.addf %320, %321 : vector<8x32xf32>
    %cst_89 = arith.constant 2.000000e+00 : f32
    %323 = vector.broadcast %cst_89 : f32 to vector<8x32xf32>
    %324 = arith.mulf %323, %322 : vector<8x32xf32>
    %325 = arith.negf %324 : vector<8x32xf32>
    %326 = math.exp %325 : vector<8x32xf32>
    %cst_90 = arith.constant 1.000000e+00 : f32
    %327 = vector.broadcast %cst_90 : f32 to vector<8x32xf32>
    %328 = arith.addf %327, %326 : vector<8x32xf32>
    %329 = arith.divf %327, %328 : vector<8x32xf32>
    %cst_91 = arith.constant 2.000000e+00 : f32
    %330 = vector.broadcast %cst_91 : f32 to vector<8x32xf32>
    %331 = arith.mulf %330, %329 : vector<8x32xf32>
    %cst_92 = arith.constant 1.000000e+00 : f32
    %332 = vector.broadcast %cst_92 : f32 to vector<8x32xf32>
    %333 = arith.subf %331, %332 : vector<8x32xf32>
    %334 = arith.mulf %319, %333 : vector<8x32xf32>
    %335 = tpu.concatenate %334, %299 in 1 : vector<8x32xf32>, vector<8x32xf32> -> vector<8x64xf32>
    %cst_93 = arith.constant dense<0.000000e+00> : vector<8x128xf32>
    %336 = tpu.matmul %335, %8, %cst_93 {dimension_numbers = #tpu.dot_dimension_numbers<[1], [0], [0], [1], [0, 0, 1, 1], [], []>} : vector<8x64xf32>, vector<64x128xf32>, vector<8x128xf32> -> vector<8x128xf32>
    %337 = vector.broadcast %9 : vector<1x128xf32> to vector<8x128xf32>
    %338 = arith.addf %336, %337 : vector<8x128xf32>
    %cst_94 = arith.constant 2.000000e+00 : f32
    %339 = vector.broadcast %cst_94 : f32 to vector<8x128xf32>
    %340 = arith.mulf %339, %338 : vector<8x128xf32>
    %341 = arith.select %5, %340, %338 : vector<8x128xi1>, vector<8x128xf32>
    %342 = arith.negf %341 : vector<8x128xf32>
    %343 = math.exp %342 : vector<8x128xf32>
    %cst_95 = arith.constant 1.000000e+00 : f32
    %344 = vector.broadcast %cst_95 : f32 to vector<8x128xf32>
    %345 = arith.addf %344, %343 : vector<8x128xf32>
    %346 = arith.divf %344, %345 : vector<8x128xf32>
    %cst_96 = arith.constant 2.000000e+00 : f32
    %347 = vector.broadcast %cst_96 : f32 to vector<8x128xf32>
    %348 = arith.mulf %347, %346 : vector<8x128xf32>
    %cst_97 = arith.constant 1.000000e+00 : f32
    %349 = vector.broadcast %cst_97 : f32 to vector<8x128xf32>
    %350 = arith.subf %348, %349 : vector<8x128xf32>
    %351 = arith.select %5, %350, %346 : vector<8x128xi1>, vector<8x128xf32>
    %352 = vector.extract_strided_slice %351 {offsets = [0, 0], sizes = [8, 32], strides = [1, 1]} : vector<8x128xf32> to vector<8x32xf32>
    %353 = vector.extract_strided_slice %351 {offsets = [0, 32], sizes = [8, 32], strides = [1, 1]} : vector<8x128xf32> to vector<8x32xf32>
    %354 = vector.extract_strided_slice %351 {offsets = [0, 64], sizes = [8, 32], strides = [1, 1]} : vector<8x128xf32> to vector<8x32xf32>
    %355 = vector.extract_strided_slice %351 {offsets = [0, 96], sizes = [8, 32], strides = [1, 1]} : vector<8x128xf32> to vector<8x32xf32>
    %356 = arith.mulf %353, %287 : vector<8x32xf32>
    %357 = arith.mulf %352, %354 : vector<8x32xf32>
    %358 = arith.addf %356, %357 : vector<8x32xf32>
    %cst_98 = arith.constant 2.000000e+00 : f32
    %359 = vector.broadcast %cst_98 : f32 to vector<8x32xf32>
    %360 = arith.mulf %359, %358 : vector<8x32xf32>
    %361 = arith.negf %360 : vector<8x32xf32>
    %362 = math.exp %361 : vector<8x32xf32>
    %cst_99 = arith.constant 1.000000e+00 : f32
    %363 = vector.broadcast %cst_99 : f32 to vector<8x32xf32>
    %364 = arith.addf %363, %362 : vector<8x32xf32>
    %365 = arith.divf %363, %364 : vector<8x32xf32>
    %cst_100 = arith.constant 2.000000e+00 : f32
    %366 = vector.broadcast %cst_100 : f32 to vector<8x32xf32>
    %367 = arith.mulf %366, %365 : vector<8x32xf32>
    %cst_101 = arith.constant 1.000000e+00 : f32
    %368 = vector.broadcast %cst_101 : f32 to vector<8x32xf32>
    %369 = arith.subf %367, %368 : vector<8x32xf32>
    %370 = arith.mulf %355, %369 : vector<8x32xf32>
    %371 = vector.extract_strided_slice %14 {offsets = [40, 0], sizes = [8, 128], strides = [1, 1]} : vector<64x128xf32> to vector<8x128xf32>
    %cst_102 = arith.constant dense<0.000000e+00> : vector<8x128xf32>
    %372 = tpu.matmul %334, %6, %cst_102 {dimension_numbers = #tpu.dot_dimension_numbers<[1], [0], [0], [1], [0, 0, 1, 1], [], []>} : vector<8x32xf32>, vector<32x128xf32>, vector<8x128xf32> -> vector<8x128xf32>
    %373 = arith.addf %371, %372 : vector<8x128xf32>
    %cst_103 = arith.constant 2.000000e+00 : f32
    %374 = vector.broadcast %cst_103 : f32 to vector<8x128xf32>
    %375 = arith.mulf %374, %373 : vector<8x128xf32>
    %376 = arith.select %5, %375, %373 : vector<8x128xi1>, vector<8x128xf32>
    %377 = arith.negf %376 : vector<8x128xf32>
    %378 = math.exp %377 : vector<8x128xf32>
    %cst_104 = arith.constant 1.000000e+00 : f32
    %379 = vector.broadcast %cst_104 : f32 to vector<8x128xf32>
    %380 = arith.addf %379, %378 : vector<8x128xf32>
    %381 = arith.divf %379, %380 : vector<8x128xf32>
    %cst_105 = arith.constant 2.000000e+00 : f32
    %382 = vector.broadcast %cst_105 : f32 to vector<8x128xf32>
    %383 = arith.mulf %382, %381 : vector<8x128xf32>
    %cst_106 = arith.constant 1.000000e+00 : f32
    %384 = vector.broadcast %cst_106 : f32 to vector<8x128xf32>
    %385 = arith.subf %383, %384 : vector<8x128xf32>
    %386 = arith.select %5, %385, %381 : vector<8x128xi1>, vector<8x128xf32>
    %387 = vector.extract_strided_slice %386 {offsets = [0, 0], sizes = [8, 32], strides = [1, 1]} : vector<8x128xf32> to vector<8x32xf32>
    %388 = vector.extract_strided_slice %386 {offsets = [0, 32], sizes = [8, 32], strides = [1, 1]} : vector<8x128xf32> to vector<8x32xf32>
    %389 = vector.extract_strided_slice %386 {offsets = [0, 64], sizes = [8, 32], strides = [1, 1]} : vector<8x128xf32> to vector<8x32xf32>
    %390 = vector.extract_strided_slice %386 {offsets = [0, 96], sizes = [8, 32], strides = [1, 1]} : vector<8x128xf32> to vector<8x32xf32>
    %391 = arith.mulf %388, %322 : vector<8x32xf32>
    %392 = arith.mulf %387, %389 : vector<8x32xf32>
    %393 = arith.addf %391, %392 : vector<8x32xf32>
    %cst_107 = arith.constant 2.000000e+00 : f32
    %394 = vector.broadcast %cst_107 : f32 to vector<8x32xf32>
    %395 = arith.mulf %394, %393 : vector<8x32xf32>
    %396 = arith.negf %395 : vector<8x32xf32>
    %397 = math.exp %396 : vector<8x32xf32>
    %cst_108 = arith.constant 1.000000e+00 : f32
    %398 = vector.broadcast %cst_108 : f32 to vector<8x32xf32>
    %399 = arith.addf %398, %397 : vector<8x32xf32>
    %400 = arith.divf %398, %399 : vector<8x32xf32>
    %cst_109 = arith.constant 2.000000e+00 : f32
    %401 = vector.broadcast %cst_109 : f32 to vector<8x32xf32>
    %402 = arith.mulf %401, %400 : vector<8x32xf32>
    %cst_110 = arith.constant 1.000000e+00 : f32
    %403 = vector.broadcast %cst_110 : f32 to vector<8x32xf32>
    %404 = arith.subf %402, %403 : vector<8x32xf32>
    %405 = arith.mulf %390, %404 : vector<8x32xf32>
    %406 = tpu.concatenate %405, %370 in 1 : vector<8x32xf32>, vector<8x32xf32> -> vector<8x64xf32>
    %cst_111 = arith.constant dense<0.000000e+00> : vector<8x128xf32>
    %407 = tpu.matmul %406, %8, %cst_111 {dimension_numbers = #tpu.dot_dimension_numbers<[1], [0], [0], [1], [0, 0, 1, 1], [], []>} : vector<8x64xf32>, vector<64x128xf32>, vector<8x128xf32> -> vector<8x128xf32>
    %408 = vector.broadcast %9 : vector<1x128xf32> to vector<8x128xf32>
    %409 = arith.addf %407, %408 : vector<8x128xf32>
    %cst_112 = arith.constant 2.000000e+00 : f32
    %410 = vector.broadcast %cst_112 : f32 to vector<8x128xf32>
    %411 = arith.mulf %410, %409 : vector<8x128xf32>
    %412 = arith.select %5, %411, %409 : vector<8x128xi1>, vector<8x128xf32>
    %413 = arith.negf %412 : vector<8x128xf32>
    %414 = math.exp %413 : vector<8x128xf32>
    %cst_113 = arith.constant 1.000000e+00 : f32
    %415 = vector.broadcast %cst_113 : f32 to vector<8x128xf32>
    %416 = arith.addf %415, %414 : vector<8x128xf32>
    %417 = arith.divf %415, %416 : vector<8x128xf32>
    %cst_114 = arith.constant 2.000000e+00 : f32
    %418 = vector.broadcast %cst_114 : f32 to vector<8x128xf32>
    %419 = arith.mulf %418, %417 : vector<8x128xf32>
    %cst_115 = arith.constant 1.000000e+00 : f32
    %420 = vector.broadcast %cst_115 : f32 to vector<8x128xf32>
    %421 = arith.subf %419, %420 : vector<8x128xf32>
    %422 = arith.select %5, %421, %417 : vector<8x128xi1>, vector<8x128xf32>
    %423 = vector.extract_strided_slice %422 {offsets = [0, 0], sizes = [8, 32], strides = [1, 1]} : vector<8x128xf32> to vector<8x32xf32>
    %424 = vector.extract_strided_slice %422 {offsets = [0, 32], sizes = [8, 32], strides = [1, 1]} : vector<8x128xf32> to vector<8x32xf32>
    %425 = vector.extract_strided_slice %422 {offsets = [0, 64], sizes = [8, 32], strides = [1, 1]} : vector<8x128xf32> to vector<8x32xf32>
    %426 = vector.extract_strided_slice %422 {offsets = [0, 96], sizes = [8, 32], strides = [1, 1]} : vector<8x128xf32> to vector<8x32xf32>
    %427 = arith.mulf %424, %358 : vector<8x32xf32>
    %428 = arith.mulf %423, %425 : vector<8x32xf32>
    %429 = arith.addf %427, %428 : vector<8x32xf32>
    %cst_116 = arith.constant 2.000000e+00 : f32
    %430 = vector.broadcast %cst_116 : f32 to vector<8x32xf32>
    %431 = arith.mulf %430, %429 : vector<8x32xf32>
    %432 = arith.negf %431 : vector<8x32xf32>
    %433 = math.exp %432 : vector<8x32xf32>
    %cst_117 = arith.constant 1.000000e+00 : f32
    %434 = vector.broadcast %cst_117 : f32 to vector<8x32xf32>
    %435 = arith.addf %434, %433 : vector<8x32xf32>
    %436 = arith.divf %434, %435 : vector<8x32xf32>
    %cst_118 = arith.constant 2.000000e+00 : f32
    %437 = vector.broadcast %cst_118 : f32 to vector<8x32xf32>
    %438 = arith.mulf %437, %436 : vector<8x32xf32>
    %cst_119 = arith.constant 1.000000e+00 : f32
    %439 = vector.broadcast %cst_119 : f32 to vector<8x32xf32>
    %440 = arith.subf %438, %439 : vector<8x32xf32>
    %441 = arith.mulf %426, %440 : vector<8x32xf32>
    %442 = vector.extract_strided_slice %14 {offsets = [48, 0], sizes = [8, 128], strides = [1, 1]} : vector<64x128xf32> to vector<8x128xf32>
    %cst_120 = arith.constant dense<0.000000e+00> : vector<8x128xf32>
    %443 = tpu.matmul %405, %6, %cst_120 {dimension_numbers = #tpu.dot_dimension_numbers<[1], [0], [0], [1], [0, 0, 1, 1], [], []>} : vector<8x32xf32>, vector<32x128xf32>, vector<8x128xf32> -> vector<8x128xf32>
    %444 = arith.addf %442, %443 : vector<8x128xf32>
    %cst_121 = arith.constant 2.000000e+00 : f32
    %445 = vector.broadcast %cst_121 : f32 to vector<8x128xf32>
    %446 = arith.mulf %445, %444 : vector<8x128xf32>
    %447 = arith.select %5, %446, %444 : vector<8x128xi1>, vector<8x128xf32>
    %448 = arith.negf %447 : vector<8x128xf32>
    %449 = math.exp %448 : vector<8x128xf32>
    %cst_122 = arith.constant 1.000000e+00 : f32
    %450 = vector.broadcast %cst_122 : f32 to vector<8x128xf32>
    %451 = arith.addf %450, %449 : vector<8x128xf32>
    %452 = arith.divf %450, %451 : vector<8x128xf32>
    %cst_123 = arith.constant 2.000000e+00 : f32
    %453 = vector.broadcast %cst_123 : f32 to vector<8x128xf32>
    %454 = arith.mulf %453, %452 : vector<8x128xf32>
    %cst_124 = arith.constant 1.000000e+00 : f32
    %455 = vector.broadcast %cst_124 : f32 to vector<8x128xf32>
    %456 = arith.subf %454, %455 : vector<8x128xf32>
    %457 = arith.select %5, %456, %452 : vector<8x128xi1>, vector<8x128xf32>
    %458 = vector.extract_strided_slice %457 {offsets = [0, 0], sizes = [8, 32], strides = [1, 1]} : vector<8x128xf32> to vector<8x32xf32>
    %459 = vector.extract_strided_slice %457 {offsets = [0, 32], sizes = [8, 32], strides = [1, 1]} : vector<8x128xf32> to vector<8x32xf32>
    %460 = vector.extract_strided_slice %457 {offsets = [0, 64], sizes = [8, 32], strides = [1, 1]} : vector<8x128xf32> to vector<8x32xf32>
    %461 = vector.extract_strided_slice %457 {offsets = [0, 96], sizes = [8, 32], strides = [1, 1]} : vector<8x128xf32> to vector<8x32xf32>
    %462 = arith.mulf %459, %393 : vector<8x32xf32>
    %463 = arith.mulf %458, %460 : vector<8x32xf32>
    %464 = arith.addf %462, %463 : vector<8x32xf32>
    %cst_125 = arith.constant 2.000000e+00 : f32
    %465 = vector.broadcast %cst_125 : f32 to vector<8x32xf32>
    %466 = arith.mulf %465, %464 : vector<8x32xf32>
    %467 = arith.negf %466 : vector<8x32xf32>
    %468 = math.exp %467 : vector<8x32xf32>
    %cst_126 = arith.constant 1.000000e+00 : f32
    %469 = vector.broadcast %cst_126 : f32 to vector<8x32xf32>
    %470 = arith.addf %469, %468 : vector<8x32xf32>
    %471 = arith.divf %469, %470 : vector<8x32xf32>
    %cst_127 = arith.constant 2.000000e+00 : f32
    %472 = vector.broadcast %cst_127 : f32 to vector<8x32xf32>
    %473 = arith.mulf %472, %471 : vector<8x32xf32>
    %cst_128 = arith.constant 1.000000e+00 : f32
    %474 = vector.broadcast %cst_128 : f32 to vector<8x32xf32>
    %475 = arith.subf %473, %474 : vector<8x32xf32>
    %476 = arith.mulf %461, %475 : vector<8x32xf32>
    %477 = tpu.concatenate %476, %441 in 1 : vector<8x32xf32>, vector<8x32xf32> -> vector<8x64xf32>
    %cst_129 = arith.constant dense<0.000000e+00> : vector<8x128xf32>
    %478 = tpu.matmul %477, %8, %cst_129 {dimension_numbers = #tpu.dot_dimension_numbers<[1], [0], [0], [1], [0, 0, 1, 1], [], []>} : vector<8x64xf32>, vector<64x128xf32>, vector<8x128xf32> -> vector<8x128xf32>
    %479 = vector.broadcast %9 : vector<1x128xf32> to vector<8x128xf32>
    %480 = arith.addf %478, %479 : vector<8x128xf32>
    %cst_130 = arith.constant 2.000000e+00 : f32
    %481 = vector.broadcast %cst_130 : f32 to vector<8x128xf32>
    %482 = arith.mulf %481, %480 : vector<8x128xf32>
    %483 = arith.select %5, %482, %480 : vector<8x128xi1>, vector<8x128xf32>
    %484 = arith.negf %483 : vector<8x128xf32>
    %485 = math.exp %484 : vector<8x128xf32>
    %cst_131 = arith.constant 1.000000e+00 : f32
    %486 = vector.broadcast %cst_131 : f32 to vector<8x128xf32>
    %487 = arith.addf %486, %485 : vector<8x128xf32>
    %488 = arith.divf %486, %487 : vector<8x128xf32>
    %cst_132 = arith.constant 2.000000e+00 : f32
    %489 = vector.broadcast %cst_132 : f32 to vector<8x128xf32>
    %490 = arith.mulf %489, %488 : vector<8x128xf32>
    %cst_133 = arith.constant 1.000000e+00 : f32
    %491 = vector.broadcast %cst_133 : f32 to vector<8x128xf32>
    %492 = arith.subf %490, %491 : vector<8x128xf32>
    %493 = arith.select %5, %492, %488 : vector<8x128xi1>, vector<8x128xf32>
    %494 = vector.extract_strided_slice %493 {offsets = [0, 0], sizes = [8, 32], strides = [1, 1]} : vector<8x128xf32> to vector<8x32xf32>
    %495 = vector.extract_strided_slice %493 {offsets = [0, 32], sizes = [8, 32], strides = [1, 1]} : vector<8x128xf32> to vector<8x32xf32>
    %496 = vector.extract_strided_slice %493 {offsets = [0, 64], sizes = [8, 32], strides = [1, 1]} : vector<8x128xf32> to vector<8x32xf32>
    %497 = vector.extract_strided_slice %493 {offsets = [0, 96], sizes = [8, 32], strides = [1, 1]} : vector<8x128xf32> to vector<8x32xf32>
    %498 = arith.mulf %495, %429 : vector<8x32xf32>
    %499 = arith.mulf %494, %496 : vector<8x32xf32>
    %500 = arith.addf %498, %499 : vector<8x32xf32>
    %cst_134 = arith.constant 2.000000e+00 : f32
    %501 = vector.broadcast %cst_134 : f32 to vector<8x32xf32>
    %502 = arith.mulf %501, %500 : vector<8x32xf32>
    %503 = arith.negf %502 : vector<8x32xf32>
    %504 = math.exp %503 : vector<8x32xf32>
    %cst_135 = arith.constant 1.000000e+00 : f32
    %505 = vector.broadcast %cst_135 : f32 to vector<8x32xf32>
    %506 = arith.addf %505, %504 : vector<8x32xf32>
    %507 = arith.divf %505, %506 : vector<8x32xf32>
    %cst_136 = arith.constant 2.000000e+00 : f32
    %508 = vector.broadcast %cst_136 : f32 to vector<8x32xf32>
    %509 = arith.mulf %508, %507 : vector<8x32xf32>
    %cst_137 = arith.constant 1.000000e+00 : f32
    %510 = vector.broadcast %cst_137 : f32 to vector<8x32xf32>
    %511 = arith.subf %509, %510 : vector<8x32xf32>
    %512 = arith.mulf %497, %511 : vector<8x32xf32>
    %513 = vector.extract_strided_slice %14 {offsets = [56, 0], sizes = [8, 128], strides = [1, 1]} : vector<64x128xf32> to vector<8x128xf32>
    %cst_138 = arith.constant dense<0.000000e+00> : vector<8x128xf32>
    %514 = tpu.matmul %476, %6, %cst_138 {dimension_numbers = #tpu.dot_dimension_numbers<[1], [0], [0], [1], [0, 0, 1, 1], [], []>} : vector<8x32xf32>, vector<32x128xf32>, vector<8x128xf32> -> vector<8x128xf32>
    %515 = arith.addf %513, %514 : vector<8x128xf32>
    %cst_139 = arith.constant 2.000000e+00 : f32
    %516 = vector.broadcast %cst_139 : f32 to vector<8x128xf32>
    %517 = arith.mulf %516, %515 : vector<8x128xf32>
    %518 = arith.select %5, %517, %515 : vector<8x128xi1>, vector<8x128xf32>
    %519 = arith.negf %518 : vector<8x128xf32>
    %520 = math.exp %519 : vector<8x128xf32>
    %cst_140 = arith.constant 1.000000e+00 : f32
    %521 = vector.broadcast %cst_140 : f32 to vector<8x128xf32>
    %522 = arith.addf %521, %520 : vector<8x128xf32>
    %523 = arith.divf %521, %522 : vector<8x128xf32>
    %cst_141 = arith.constant 2.000000e+00 : f32
    %524 = vector.broadcast %cst_141 : f32 to vector<8x128xf32>
    %525 = arith.mulf %524, %523 : vector<8x128xf32>
    %cst_142 = arith.constant 1.000000e+00 : f32
    %526 = vector.broadcast %cst_142 : f32 to vector<8x128xf32>
    %527 = arith.subf %525, %526 : vector<8x128xf32>
    %528 = arith.select %5, %527, %523 : vector<8x128xi1>, vector<8x128xf32>
    %529 = vector.extract_strided_slice %528 {offsets = [0, 0], sizes = [8, 32], strides = [1, 1]} : vector<8x128xf32> to vector<8x32xf32>
    %530 = vector.extract_strided_slice %528 {offsets = [0, 32], sizes = [8, 32], strides = [1, 1]} : vector<8x128xf32> to vector<8x32xf32>
    %531 = vector.extract_strided_slice %528 {offsets = [0, 64], sizes = [8, 32], strides = [1, 1]} : vector<8x128xf32> to vector<8x32xf32>
    %532 = vector.extract_strided_slice %528 {offsets = [0, 96], sizes = [8, 32], strides = [1, 1]} : vector<8x128xf32> to vector<8x32xf32>
    %533 = arith.mulf %530, %464 : vector<8x32xf32>
    %534 = arith.mulf %529, %531 : vector<8x32xf32>
    %535 = arith.addf %533, %534 : vector<8x32xf32>
    %cst_143 = arith.constant 2.000000e+00 : f32
    %536 = vector.broadcast %cst_143 : f32 to vector<8x32xf32>
    %537 = arith.mulf %536, %535 : vector<8x32xf32>
    %538 = arith.negf %537 : vector<8x32xf32>
    %539 = math.exp %538 : vector<8x32xf32>
    %cst_144 = arith.constant 1.000000e+00 : f32
    %540 = vector.broadcast %cst_144 : f32 to vector<8x32xf32>
    %541 = arith.addf %540, %539 : vector<8x32xf32>
    %542 = arith.divf %540, %541 : vector<8x32xf32>
    %cst_145 = arith.constant 2.000000e+00 : f32
    %543 = vector.broadcast %cst_145 : f32 to vector<8x32xf32>
    %544 = arith.mulf %543, %542 : vector<8x32xf32>
    %cst_146 = arith.constant 1.000000e+00 : f32
    %545 = vector.broadcast %cst_146 : f32 to vector<8x32xf32>
    %546 = arith.subf %544, %545 : vector<8x32xf32>
    %547 = arith.mulf %532, %546 : vector<8x32xf32>
    %548 = tpu.concatenate %547, %512 in 1 : vector<8x32xf32>, vector<8x32xf32> -> vector<8x64xf32>
    %cst_147 = arith.constant dense<0.000000e+00> : vector<8x128xf32>
    %549 = tpu.matmul %548, %8, %cst_147 {dimension_numbers = #tpu.dot_dimension_numbers<[1], [0], [0], [1], [0, 0, 1, 1], [], []>} : vector<8x64xf32>, vector<64x128xf32>, vector<8x128xf32> -> vector<8x128xf32>
    %550 = vector.broadcast %9 : vector<1x128xf32> to vector<8x128xf32>
    %551 = arith.addf %549, %550 : vector<8x128xf32>
    %cst_148 = arith.constant 2.000000e+00 : f32
    %552 = vector.broadcast %cst_148 : f32 to vector<8x128xf32>
    %553 = arith.mulf %552, %551 : vector<8x128xf32>
    %554 = arith.select %5, %553, %551 : vector<8x128xi1>, vector<8x128xf32>
    %555 = arith.negf %554 : vector<8x128xf32>
    %556 = math.exp %555 : vector<8x128xf32>
    %cst_149 = arith.constant 1.000000e+00 : f32
    %557 = vector.broadcast %cst_149 : f32 to vector<8x128xf32>
    %558 = arith.addf %557, %556 : vector<8x128xf32>
    %559 = arith.divf %557, %558 : vector<8x128xf32>
    %cst_150 = arith.constant 2.000000e+00 : f32
    %560 = vector.broadcast %cst_150 : f32 to vector<8x128xf32>
    %561 = arith.mulf %560, %559 : vector<8x128xf32>
    %cst_151 = arith.constant 1.000000e+00 : f32
    %562 = vector.broadcast %cst_151 : f32 to vector<8x128xf32>
    %563 = arith.subf %561, %562 : vector<8x128xf32>
    %564 = arith.select %5, %563, %559 : vector<8x128xi1>, vector<8x128xf32>
    %565 = vector.extract_strided_slice %564 {offsets = [0, 0], sizes = [8, 32], strides = [1, 1]} : vector<8x128xf32> to vector<8x32xf32>
    %566 = vector.extract_strided_slice %564 {offsets = [0, 32], sizes = [8, 32], strides = [1, 1]} : vector<8x128xf32> to vector<8x32xf32>
    %567 = vector.extract_strided_slice %564 {offsets = [0, 64], sizes = [8, 32], strides = [1, 1]} : vector<8x128xf32> to vector<8x32xf32>
    %568 = vector.extract_strided_slice %564 {offsets = [0, 96], sizes = [8, 32], strides = [1, 1]} : vector<8x128xf32> to vector<8x32xf32>
    %569 = arith.mulf %566, %500 : vector<8x32xf32>
    %570 = arith.mulf %565, %567 : vector<8x32xf32>
    %571 = arith.addf %569, %570 : vector<8x32xf32>
    %cst_152 = arith.constant 2.000000e+00 : f32
    %572 = vector.broadcast %cst_152 : f32 to vector<8x32xf32>
    %573 = arith.mulf %572, %571 : vector<8x32xf32>
    %574 = arith.negf %573 : vector<8x32xf32>
    %575 = math.exp %574 : vector<8x32xf32>
    %cst_153 = arith.constant 1.000000e+00 : f32
    %576 = vector.broadcast %cst_153 : f32 to vector<8x32xf32>
    %577 = arith.addf %576, %575 : vector<8x32xf32>
    %578 = arith.divf %576, %577 : vector<8x32xf32>
    %cst_154 = arith.constant 2.000000e+00 : f32
    %579 = vector.broadcast %cst_154 : f32 to vector<8x32xf32>
    %580 = arith.mulf %579, %578 : vector<8x32xf32>
    %cst_155 = arith.constant 1.000000e+00 : f32
    %581 = vector.broadcast %cst_155 : f32 to vector<8x32xf32>
    %582 = arith.subf %580, %581 : vector<8x32xf32>
    %583 = arith.mulf %568, %582 : vector<8x32xf32>
    %c0_156 = arith.constant 0 : index
    %c0_157 = arith.constant 0 : index
    %584 = vector.load %arg6[%c0_156, %c0_157] : memref<32x4xf32, #tpu.memory_space<vmem>>, vector<32x4xf32>
    %cst_158 = arith.constant dense<0.000000e+00> : vector<8x4xf32>
    %585 = tpu.matmul %583, %584, %cst_158 {dimension_numbers = #tpu.dot_dimension_numbers<[1], [0], [0], [1], [0, 0, 1, 1], [], []>} : vector<8x32xf32>, vector<32x4xf32>, vector<8x4xf32> -> vector<8x4xf32>
    %c0_159 = arith.constant 0 : index
    %c0_160 = arith.constant 0 : index
    %586 = vector.load %arg7[%c0_159, %c0_160] : memref<1x4xf32, #tpu.memory_space<vmem>>, vector<1x4xf32>
    %587 = vector.broadcast %586 : vector<1x4xf32> to vector<8x4xf32>
    %588 = arith.addf %585, %587 : vector<8x4xf32>
    %c0_161 = arith.constant 0 : index
    %c0_162 = arith.constant 0 : index
    %589 = vector.load %arg8[%c0_161, %c0_162] : memref<8x4xf32, #tpu.memory_space<vmem>>, vector<8x4xf32>
    tpu.vector_store %arg8[%c0_161, %c0_162], %588 {strides = array<i32>} : memref<8x4xf32, #tpu.memory_space<vmem>>, vector<8x4xf32>,
    return
  }
}

</mosaic_0001>

<llo_original>
// kernel: tpu_custom_call.1
$region0: #{tpu_custom_call.1}
  #allocation0 [shape = 'u32[]', space=smem, size = 0x4, offset = 0x4, fixed_abs, tag = 'smem constant byte address 0x4 - core index']
  #allocation1 [shape = 'u32[144,128]{1,0:T(1,128)}', space=vmem, size = 0x12000, scoped, tag = 'internal scratch']
  %s0 = inlined_call_operand.vmem [shape: f32[64,8], index: 0, kind: input, shape index: {}]
  %s1 = inlined_call_operand.vmem [shape: f32[8,128], index: 1, kind: input, shape index: {}]
  %s2 = inlined_call_operand.vmem [shape: f32[32,128], index: 2, kind: input, shape index: {}]
  %s3 = inlined_call_operand.vmem [shape: f32[1,128], index: 3, kind: input, shape index: {}]
  %s4 = inlined_call_operand.vmem [shape: f32[64,128], index: 4, kind: input, shape index: {}]
  %s5 = inlined_call_operand.vmem [shape: f32[1,128], index: 5, kind: input, shape index: {}]
  %s6 = inlined_call_operand.vmem [shape: f32[32,4], index: 6, kind: input, shape index: {}]
  %s7 = inlined_call_operand.vmem [shape: f32[1,4], index: 7, kind: input, shape index: {}]
  %s8 = inlined_call_operand.vmem [shape: f32[8,4], index: 8, kind: output, shape index: {}]
  %s9 = sld [smem:[#allocation0]]
  $region42: #{tpu_custom_call.1} parent=0
    _
  %s11 = ssub.s32 1, %s9
  %s12 = scalar_select 0, %s11, %s9
  // Predicated region
  $region2: #{tpu_custom_call.1} parent=0 // pred_check
    _
  $region3: #{tpu_custom_call.1} parent=0 // pred_check_branch
    %14 = sbr.rel (0) target = $region5
  $region4: #{tpu_custom_call.1} parent=0 // pred_region
    _
  $region5: #{tpu_custom_call.1} parent=0 // pred_fallthru
    _
  // Predicated region
  $region6: #{tpu_custom_call.1} parent=0 // pred_check
    _
  $region7: #{tpu_custom_call.1} parent=0 // pred_check_branch
    %16 = sbr.rel (0) target = $region9
  $region8: #{tpu_custom_call.1} parent=0 // pred_region
    _
  $region9: #{tpu_custom_call.1} parent=0 // pred_fallthru
    _
  // Predicated region
  $region10: #{tpu_custom_call.1} parent=0 // pred_check
    _
  $region11: #{tpu_custom_call.1} parent=0 // pred_check_branch
    %18 = sbr.rel (0) target = $region13
  $region12: #{tpu_custom_call.1} parent=0 // pred_region
    _
  $region13: #{tpu_custom_call.1} parent=0 // pred_fallthru
    _
  // Predicated region
  $region14: #{tpu_custom_call.1} parent=0 // pred_check
    _
  $region15: #{tpu_custom_call.1} parent=0 // pred_check_branch
    %20 = sbr.rel (0) target = $region17
  $region16: #{tpu_custom_call.1} parent=0 // pred_region
    _
  $region17: #{tpu_custom_call.1} parent=0 // pred_fallthru
    _
  // Predicated region
  $region18: #{tpu_custom_call.1} parent=0 // pred_check
    _
  $region19: #{tpu_custom_call.1} parent=0 // pred_check_branch
    %22 = sbr.rel (0) target = $region21
  $region20: #{tpu_custom_call.1} parent=0 // pred_region
    _
  $region21: #{tpu_custom_call.1} parent=0 // pred_fallthru
    _
  // Predicated region
  $region22: #{tpu_custom_call.1} parent=0 // pred_check
    _
  $region23: #{tpu_custom_call.1} parent=0 // pred_check_branch
    %24 = sbr.rel (0) target = $region25
  $region24: #{tpu_custom_call.1} parent=0 // pred_region
    _
  $region25: #{tpu_custom_call.1} parent=0 // pred_fallthru
    _
  // Predicated region
  $region26: #{tpu_custom_call.1} parent=0 // pred_check
    _
  $region27: #{tpu_custom_call.1} parent=0 // pred_check_branch
    %26 = sbr.rel (0) target = $region29
  $region28: #{tpu_custom_call.1} parent=0 // pred_region
    _
  $region29: #{tpu_custom_call.1} parent=0 // pred_fallthru
    _
  // Predicated region
  $region30: #{tpu_custom_call.1} parent=0 // pred_check
    _
  $region31: #{tpu_custom_call.1} parent=0 // pred_check_branch
    %28 = sbr.rel (0) target = $region33
  $region32: #{tpu_custom_call.1} parent=0 // pred_region
    _
  $region33: #{tpu_custom_call.1} parent=0 // pred_fallthru
    _
  %v29 = vlaneseq
  %v30 = vand.u32 %v29, 127
  %vm31 = vcmp.ge.s32.totalorder %v30, 64
  %vm32 = vcmp.lt.s32.totalorder %v30, 96
  %vm33 = vmand %vm31, %vm32
  %v34 = vld [vmem:[%s2] sm:$0xff]
  %v35 = vld [vmem:[%s2 + $0x8] sm:$0xff]
  %v36 = vld [vmem:[%s2 + $0x10] sm:$0xff]
  %v37 = vld [vmem:[%s2 + $0x18] sm:$0xff]
  %v38 = vld [vmem:[%s3] sm:$0x1]
  %v39 = vld [vmem:[%s4] sm:$0xff]
  %v40 = vld [vmem:[%s4 + $0x8] sm:$0xff]
  %v41 = vld [vmem:[%s4 + $0x10] sm:$0xff]
  %v42 = vld [vmem:[%s4 + $0x18] sm:$0xff]
  %v43 = vld [vmem:[%s4 + $0x20] sm:$0xff]
  %v44 = vld [vmem:[%s4 + $0x28] sm:$0xff]
  %v45 = vld [vmem:[%s4 + $0x30] sm:$0xff]
  %v46 = vld [vmem:[%s4 + $0x38] sm:$0xff]
  %v47 = vld [vmem:[%s5] sm:$0x1]
  %v48 = vld [vmem:[%s0] sm:$0xff]
  %v49 = vld [vmem:[%s0 + $0x8] sm:$0xff]
  %v50 = vld [vmem:[%s0 + $0x10] sm:$0xff]
  %v51 = vld [vmem:[%s0 + $0x18] sm:$0xff]
  %v52 = vld [vmem:[%s0 + $0x20] sm:$0xff]
  %v53 = vld [vmem:[%s0 + $0x28] sm:$0xff]
  %v54 = vld [vmem:[%s0 + $0x30] sm:$0xff]
  %v55 = vld [vmem:[%s0 + $0x38] sm:$0xff]
  %v56 = vld [vmem:[%s1] sm:$0xff]
  %v58 = vlaneseq
  %v59 = vshrl.u32 %v58, 7
  %v60 = vsub.s32 0, %v59
  %v61 = vrot.slane %v38, %v60
  %vm63 = vcmask 64512
  %v65 = vsel %vm63, %v48, 0
  %v68 = vsel %vm63, %v49, 0
  %v71 = vsel %vm63, %v50, 0
  %v74 = vsel %vm63, %v51, 0
  %v77 = vsel %vm63, %v52, 0
  %v80 = vsel %vm63, %v53, 0
  %v83 = vsel %vm63, %v54, 0
  %v86 = vsel %vm63, %v55, 0
  %88 = vmatprep.subr.mxu0 0.0
  %89 = vmatpush1.msra.mxu0 %v56
  %90 = vmatprep.subr.mxu0 0.0
  %91 = vmatpush1.msra.mxu0 0.0
  %92 = vmatprep.subr.mxu0 0.0
  %93 = vmatpush1.msra.mxu0 0.0
  %94 = vmatprep.subr.mxu0 0.0
  %95 = vmatpush1.msra.mxu0 0.0
  %96 = vmatprep.subr.mxu0 0.0
  %97 = vmatpush1.msra.mxu0 0.0
  %98 = vmatprep.subr.mxu0 0.0
  %99 = vmatpush1.msra.mxu0 0.0
  %100 = vmatprep.subr.mxu0 0.0
  %101 = vmatpush1.msra.mxu0 0.0
  %102 = vmatprep.subr.mxu0 0.0
  %103 = vmatpush1.msra.mxu0 0.0
  %104 = vmatprep.subr.mxu0 0.0
  %105 = vmatpush1.msra.mxu0 0.0
  %106 = vmatprep.subr.mxu0 0.0
  %107 = vmatpush1.msra.mxu0 0.0
  %108 = vmatprep.subr.mxu0 0.0
  %109 = vmatpush1.msra.mxu0 0.0
  %110 = vmatprep.subr.mxu0 0.0
  %111 = vmatpush1.msra.mxu0 0.0
  %112 = vmatprep.subr.mxu0 0.0
  %113 = vmatpush1.msra.mxu0 0.0
  %114 = vmatprep.subr.mxu0 0.0
  %115 = vmatpush1.msra.mxu0 0.0
  %116 = vmatprep.subr.mxu0 0.0
  %117 = vmatpush1.msra.mxu0 0.0
  %118 = vmatprep.subr.mxu0 0.0
  %119 = vmatpush1.msra.mxu0 0.0
  %120 = vmatprep.subr.mxu0 0.0
  %121 = vmatpush1.msra.mxu0 0.0
  %122 = vmatprep.subr.mxu0 0.0
  %123 = vmatpush1.msra.mxu0 0.0
  %124 = vmatprep.subr.mxu0 0.0
  %125 = vmatpush1.msra.mxu0 0.0
  %126 = vmatprep.subr.mxu0 0.0
  %127 = vmatpush1.msra.mxu0 0.0
  %128 = vmatprep.subr.mxu0 0.0
  %129 = vmatpush1.msra.mxu0 0.0
  %130 = vmatprep.subr.mxu0 0.0
  %131 = vmatpush1.msra.mxu0 0.0
  %132 = vmatprep.subr.mxu0 0.0
  %133 = vmatpush1.msra.mxu0 0.0
  %134 = vmatprep.subr.mxu0 0.0
  %135 = vmatpush1.msra.mxu0 0.0
  %136 = vmatprep.subr.mxu0 0.0
  %137 = vmatpush1.msra.mxu0 0.0
  %138 = vmatprep.subr.mxu0 0.0
  %139 = vmatpush1.msra.mxu0 0.0
  %140 = vmatprep.subr.mxu0 0.0
  %141 = vmatpush1.msra.mxu0 0.0
  %142 = vmatprep.subr.mxu0 0.0
  %143 = vmatpush1.msra.mxu0 0.0
  %144 = vmatprep.subr.mxu0 0.0
  %145 = vmatpush1.msra.mxu0 0.0
  %146 = vmatprep.subr.mxu0 0.0
  %147 = vmatpush1.msra.mxu0 0.0
  %148 = vmatprep.subr.mxu0 0.0
  %149 = vmatpush1.msra.mxu0 0.0
  %150 = vmatprep.subr.mxu0 0.0
  %151 = vmatpush1.msra.mxu0 0.0
  %152 = vmatprep.mubr.f32.mxu0 0.0
  %153 = vmatmul.mubr.f32.gmra.mrb[0].mxu0 %v65
  %v154 = vpop.f32.mrb[0].mxu0
  %v155 = vadd.f32 %v61, %v154
  %v156 = vpop.f32.mrb[0].mxu0
  %157 = vmatprep.mubr.f32.mxu0 0.0
  %158 = vmatmul.mubr.f32.gmra.mrb[0].mxu0 %v68
  %v159 = vpop.f32.mrb[0].mxu0
  %v160 = vadd.f32 %v61, %v159
  %v161 = vpop.f32.mrb[0].mxu0
  %162 = vmatprep.mubr.f32.mxu0 0.0
  %163 = vmatmul.mubr.f32.gmra.mrb[0].mxu0 %v71
  %v164 = vpop.f32.mrb[0].mxu0
  %v165 = vadd.f32 %v61, %v164
  %v166 = vpop.f32.mrb[0].mxu0
  %167 = vmatprep.mubr.f32.mxu0 0.0
  %168 = vmatmul.mubr.f32.gmra.mrb[0].mxu0 %v74
  %v169 = vpop.f32.mrb[0].mxu0
  %v170 = vadd.f32 %v61, %v169
  %v171 = vpop.f32.mrb[0].mxu0
  %172 = vmatprep.mubr.f32.mxu0 0.0
  %173 = vmatmul.mubr.f32.gmra.mrb[0].mxu0 %v77
  %v174 = vpop.f32.mrb[0].mxu0
  %v175 = vadd.f32 %v61, %v174
  %v176 = vpop.f32.mrb[0].mxu0
  %177 = vmatprep.mubr.f32.mxu0 0.0
  %178 = vmatmul.mubr.f32.gmra.mrb[0].mxu0 %v80
  %v179 = vpop.f32.mrb[0].mxu0
  %v180 = vadd.f32 %v61, %v179
  %v181 = vpop.f32.mrb[0].mxu0
  %182 = vmatprep.mubr.f32.mxu0 0.0
  %183 = vmatmul.mubr.f32.gmra.mrb[0].mxu0 %v83
  %v184 = vpop.f32.mrb[0].mxu0
  %v185 = vadd.f32 %v61, %v184
  %v186 = vpop.f32.mrb[0].mxu0
  %187 = vmatprep.mubr.f32.mxu0 0.0
  %188 = vmatmul.mubr.f32.gmra.mrb[0].mxu0 %v86
  %v189 = vpop.f32.mrb[0].mxu0
  %v190 = vadd.f32 %v61, %v189
  %v191 = vpop.f32.mrb[0].mxu0
  %192 = vdwg.mxu0
  %vm193 = vcmask 261120
  %v195 = vsel %vm193, 0.0, 0
  %197 = vmatprep.subr.mxu0 0.0
  %198 = vmatpush1.msra.mxu0 %v34
  %199 = vmatprep.subr.mxu0 0.0
  %200 = vmatpush1.msra.mxu0 %v35
  %201 = vmatprep.subr.mxu0 0.0
  %202 = vmatpush1.msra.mxu0 %v36
  %203 = vmatprep.subr.mxu0 0.0
  %204 = vmatpush1.msra.mxu0 %v37
  %205 = vmatprep.subr.mxu0 0.0
  %206 = vmatpush1.msra.mxu0 0.0
  %207 = vmatprep.subr.mxu0 0.0
  %208 = vmatpush1.msra.mxu0 0.0
  %209 = vmatprep.subr.mxu0 0.0
  %210 = vmatpush1.msra.mxu0 0.0
  %211 = vmatprep.subr.mxu0 0.0
  %212 = vmatpush1.msra.mxu0 0.0
  %213 = vmatprep.subr.mxu0 0.0
  %214 = vmatpush1.msra.mxu0 0.0
  %215 = vmatprep.subr.mxu0 0.0
  %216 = vmatpush1.msra.mxu0 0.0
  %217 = vmatprep.subr.mxu0 0.0
  %218 = vmatpush1.msra.mxu0 0.0
  %219 = vmatprep.subr.mxu0 0.0
  %220 = vmatpush1.msra.mxu0 0.0
  %221 = vmatprep.subr.mxu0 0.0
  %222 = vmatpush1.msra.mxu0 0.0
  %223 = vmatprep.subr.mxu0 0.0
  %224 = vmatpush1.msra.mxu0 0.0
  %225 = vmatprep.subr.mxu0 0.0
  %226 = vmatpush1.msra.mxu0 0.0
  %227 = vmatprep.subr.mxu0 0.0
  %228 = vmatpush1.msra.mxu0 0.0
  %229 = vmatprep.subr.mxu0 0.0
  %230 = vmatpush1.msra.mxu0 0.0
  %231 = vmatprep.subr.mxu0 0.0
  %232 = vmatpush1.msra.mxu0 0.0
  %233 = vmatprep.subr.mxu0 0.0
  %234 = vmatpush1.msra.mxu0 0.0
  %235 = vmatprep.subr.mxu0 0.0
  %236 = vmatpush1.msra.mxu0 0.0
  %237 = vmatprep.subr.mxu0 0.0
  %238 = vmatpush1.msra.mxu0 0.0
  %239 = vmatprep.subr.mxu0 0.0
  %240 = vmatpush1.msra.mxu0 0.0
  %241 = vmatprep.subr.mxu0 0.0
  %242 = vmatpush1.msra.mxu0 0.0
  %243 = vmatprep.subr.mxu0 0.0
  %244 = vmatpush1.msra.mxu0 0.0
  %245 = vmatprep.subr.mxu0 0.0
  %246 = vmatpush1.msra.mxu0 0.0
  %247 = vmatprep.subr.mxu0 0.0
  %248 = vmatpush1.msra.mxu0 0.0
  %249 = vmatprep.subr.mxu0 0.0
  %250 = vmatpush1.msra.mxu0 0.0
  %251 = vmatprep.subr.mxu0 0.0
  %252 = vmatpush1.msra.mxu0 0.0
  %253 = vmatprep.subr.mxu0 0.0
  %254 = vmatpush1.msra.mxu0 0.0
  %255 = vmatprep.subr.mxu0 0.0
  %256 = vmatpush1.msra.mxu0 0.0
  %257 = vmatprep.subr.mxu0 0.0
  %258 = vmatpush1.msra.mxu0 0.0
  %259 = vmatprep.subr.mxu0 0.0
  %260 = vmatpush1.msra.mxu0 0.0
  %261 = vmatprep.mubr.f32.mxu0 0.0
  %262 = vmatmul.mubr.f32.gmra.mrb[0].mxu0 %v195
  %v263 = vpop.f32.mrb[0].mxu0
  %v264 = vadd.f32 0.0, %v263
  %v265 = vpop.f32.mrb[0].mxu0
  %266 = vdwg.mxu0
  %v267 = vadd.f32 %v155, %v264
  %v268 = vmul.f32 %v267, 2.0
  %v269 = vsel %vm33, %v268, %v267
  %v270 = vxor.u32 %v269, 2147483648
  %v271 = vmul.f32 %v270, 1.442695
  %v272 = vpow.pop %v271
  %v273 = vadd.f32 %v272, 1.0
  %v274 = vrcp.pop %v273
  %v275 = vmul.f32 1.0, %v274
  %v276 = vmul.f32 %v275, 2.0
  %v277 = vsub.f32 %v276, 1.0
  %v278 = vsel %vm33, %v277, %v275
  %v279 = vmul.f32 %v278, 0.0
  %281 = vrot.lane.b32.xlu0 %v278, 64
  %v282 = vpop.permute.xlu0 %281
  %v284 = vmul.f32 %v278, %v282
  %286 = vrot.lane.b32.xlu0 %v284, 32
  %v287 = vpop.permute.xlu0 %286
  %v289 = vadd.f32 %v279, %v287
  %v290 = vmul.f32 %v289, 2.0
  %v291 = vxor.u32 %v290, 2147483648
  %v292 = vmul.f32 %v291, 1.442695
  %v293 = vpow.pop %v292
  %v294 = vadd.f32 %v293, 1.0
  %v295 = vrcp.pop %v294
  %v296 = vmul.f32 1.0, %v295
  %v297 = vmul.f32 %v296, 2.0
  %v298 = vsub.f32 %v297, 1.0
  %300 = vrot.lane.b32.xlu0 %v298, 64
  %v301 = vpop.permute.xlu0 %300
  %v303 = vmul.f32 %v278, %v301
  %305 = vrot.lane.b32.xlu0 %v303, 32
  %v306 = vpop.permute.xlu0 %305
  %v308 = vsel %vm193, %v306, 0.0
  %v310 = vlaneseq
  %v311 = vshrl.u32 %v310, 7
  %v312 = vsub.s32 0, %v311
  %v313 = vrot.slane %v47, %v312
  %vm315 = vcmask 523264
  %v317 = vsel %vm315, %v308, 0
  %319 = vmatprep.subr.mxu0 0.0
  %320 = vmatpush1.msra.mxu0 %v39
  %321 = vmatprep.subr.mxu0 0.0
  %322 = vmatpush1.msra.mxu0 %v40
  %323 = vmatprep.subr.mxu0 0.0
  %324 = vmatpush1.msra.mxu0 %v41
  %325 = vmatprep.subr.mxu0 0.0
  %326 = vmatpush1.msra.mxu0 %v42
  %327 = vmatprep.subr.mxu0 0.0
  %328 = vmatpush1.msra.mxu0 %v43
  %329 = vmatprep.subr.mxu0 0.0
  %330 = vmatpush1.msra.mxu0 %v44
  %331 = vmatprep.subr.mxu0 0.0
  %332 = vmatpush1.msra.mxu0 %v45
  %333 = vmatprep.subr.mxu0 0.0
  %334 = vmatpush1.msra.mxu0 %v46
  %335 = vmatprep.subr.mxu0 0.0
  %336 = vmatpush1.msra.mxu0 0.0
  %337 = vmatprep.subr.mxu0 0.0
  %338 = vmatpush1.msra.mxu0 0.0
  %339 = vmatprep.subr.mxu0 0.0
  %340 = vmatpush1.msra.mxu0 0.0
  %341 = vmatprep.subr.mxu0 0.0
  %342 = vmatpush1.msra.mxu0 0.0
  %343 = vmatprep.subr.mxu0 0.0
  %344 = vmatpush1.msra.mxu0 0.0
  %345 = vmatprep.subr.mxu0 0.0
  %346 = vmatpush1.msra.mxu0 0.0
  %347 = vmatprep.subr.mxu0 0.0
  %348 = vmatpush1.msra.mxu0 0.0
  %349 = vmatprep.subr.mxu0 0.0
  %350 = vmatpush1.msra.mxu0 0.0
  %351 = vmatprep.subr.mxu0 0.0
  %352 = vmatpush1.msra.mxu0 0.0
  %353 = vmatprep.subr.mxu0 0.0
  %354 = vmatpush1.msra.mxu0 0.0
  %355 = vmatprep.subr.mxu0 0.0
  %356 = vmatpush1.msra.mxu0 0.0
  %357 = vmatprep.subr.mxu0 0.0
  %358 = vmatpush1.msra.mxu0 0.0
  %359 = vmatprep.subr.mxu0 0.0
  %360 = vmatpush1.msra.mxu0 0.0
  %361 = vmatprep.subr.mxu0 0.0
  %362 = vmatpush1.msra.mxu0 0.0
  %363 = vmatprep.subr.mxu0 0.0
  %364 = vmatpush1.msra.mxu0 0.0
  %365 = vmatprep.subr.mxu0 0.0
  %366 = vmatpush1.msra.mxu0 0.0
  %367 = vmatprep.subr.mxu0 0.0
  %368 = vmatpush1.msra.mxu0 0.0
  %369 = vmatprep.subr.mxu0 0.0
  %370 = vmatpush1.msra.mxu0 0.0
  %371 = vmatprep.subr.mxu0 0.0
  %372 = vmatpush1.msra.mxu0 0.0
  %373 = vmatprep.subr.mxu0 0.0
  %374 = vmatpush1.msra.mxu0 0.0
  %375 = vmatprep.subr.mxu0 0.0
  %376 = vmatpush1.msra.mxu0 0.0
  %377 = vmatprep.subr.mxu0 0.0
  %378 = vmatpush1.msra.mxu0 0.0
  %379 = vmatprep.subr.mxu0 0.0
  %380 = vmatpush1.msra.mxu0 0.0
  %381 = vmatprep.subr.mxu0 0.0
  %382 = vmatpush1.msra.mxu0 0.0
  %383 = vmatprep.mubr.f32.mxu0 0.0
  %384 = vmatmul.mubr.f32.gmra.mrb[0].mxu0 %v317
  %v385 = vpop.f32.mrb[0].mxu0
  %v386 = vadd.f32 %v313, %v385
  %v387 = vpop.f32.mrb[0].mxu0
  %388 = vdwg.mxu0
  %v389 = vmul.f32 %v386, 2.0
  %v390 = vsel %vm33, %v389, %v386
  %v391 = vxor.u32 %v390, 2147483648
  %v392 = vmul.f32 %v391, 1.442695
  %v393 = vpow.pop %v392
  %v394 = vadd.f32 %v393, 1.0
  %v395 = vrcp.pop %v394
  %v396 = vmul.f32 1.0, %v395
  %v397 = vmul.f32 %v396, 2.0
  %v398 = vsub.f32 %v397, 1.0
  %v399 = vsel %vm33, %v398, %v396
  %v400 = vmul.f32 %v399, 0.0
  %402 = vrot.lane.b32.xlu0 %v399, 64
  %v403 = vpop.permute.xlu0 %402
  %v405 = vmul.f32 %v399, %v403
  %407 = vrot.lane.b32.xlu0 %v405, 32
  %v408 = vpop.permute.xlu0 %407
  %v410 = vadd.f32 %v400, %v408
  %v411 = vmul.f32 %v410, 2.0
  %v412 = vxor.u32 %v411, 2147483648
  %v413 = vmul.f32 %v412, 1.442695
  %v414 = vpow.pop %v413
  %v415 = vadd.f32 %v414, 1.0
  %v416 = vrcp.pop %v415
  %v417 = vmul.f32 1.0, %v416
  %v418 = vmul.f32 %v417, 2.0
  %v419 = vsub.f32 %v418, 1.0
  %421 = vrot.lane.b32.xlu0 %v419, 64
  %v422 = vpop.permute.xlu0 %421
  %v424 = vmul.f32 %v399, %v422
  %v425 = vsel %vm193, %v306, 0
  %427 = vmatprep.subr.mxu0 0.0
  %428 = vmatpush1.msra.mxu0 %v34
  %429 = vmatprep.subr.mxu0 0.0
  %430 = vmatpush1.msra.mxu0 %v35
  %431 = vmatprep.subr.mxu0 0.0
  %432 = vmatpush1.msra.mxu0 %v36
  %433 = vmatprep.subr.mxu0 0.0
  %434 = vmatpush1.msra.mxu0 %v37
  %435 = vmatprep.subr.mxu0 0.0
  %436 = vmatpush1.msra.mxu0 0.0
  %437 = vmatprep.subr.mxu0 0.0
  %438 = vmatpush1.msra.mxu0 0.0
  %439 = vmatprep.subr.mxu0 0.0
  %440 = vmatpush1.msra.mxu0 0.0
  %441 = vmatprep.subr.mxu0 0.0
  %442 = vmatpush1.msra.mxu0 0.0
  %443 = vmatprep.subr.mxu0 0.0
  %444 = vmatpush1.msra.mxu0 0.0
  %445 = vmatprep.subr.mxu0 0.0
  %446 = vmatpush1.msra.mxu0 0.0
  %447 = vmatprep.subr.mxu0 0.0
  %448 = vmatpush1.msra.mxu0 0.0
  %449 = vmatprep.subr.mxu0 0.0
  %450 = vmatpush1.msra.mxu0 0.0
  %451 = vmatprep.subr.mxu0 0.0
  %452 = vmatpush1.msra.mxu0 0.0
  %453 = vmatprep.subr.mxu0 0.0
  %454 = vmatpush1.msra.mxu0 0.0
  %455 = vmatprep.subr.mxu0 0.0
  %456 = vmatpush1.msra.mxu0 0.0
  %457 = vmatprep.subr.mxu0 0.0
  %458 = vmatpush1.msra.mxu0 0.0
  %459 = vmatprep.subr.mxu0 0.0
  %460 = vmatpush1.msra.mxu0 0.0
  %461 = vmatprep.subr.mxu0 0.0
  %462 = vmatpush1.msra.mxu0 0.0
  %463 = vmatprep.subr.mxu0 0.0
  %464 = vmatpush1.msra.mxu0 0.0
  %465 = vmatprep.subr.mxu0 0.0
  %466 = vmatpush1.msra.mxu0 0.0
  %467 = vmatprep.subr.mxu0 0.0
  %468 = vmatpush1.msra.mxu0 0.0
  %469 = vmatprep.subr.mxu0 0.0
  %470 = vmatpush1.msra.mxu0 0.0
  %471 = vmatprep.subr.mxu0 0.0
  %472 = vmatpush1.msra.mxu0 0.0
  %473 = vmatprep.subr.mxu0 0.0
  %474 = vmatpush1.msra.mxu0 0.0
  %475 = vmatprep.subr.mxu0 0.0
  %476 = vmatpush1.msra.mxu0 0.0
  %477 = vmatprep.subr.mxu0 0.0
  %478 = vmatpush1.msra.mxu0 0.0
  %479 = vmatprep.subr.mxu0 0.0
  %480 = vmatpush1.msra.mxu0 0.0
  %481 = vmatprep.subr.mxu0 0.0
  %482 = vmatpush1.msra.mxu0 0.0
  %483 = vmatprep.subr.mxu0 0.0
  %484 = vmatpush1.msra.mxu0 0.0
  %485 = vmatprep.subr.mxu0 0.0
  %486 = vmatpush1.msra.mxu0 0.0
  %487 = vmatprep.subr.mxu0 0.0
  %488 = vmatpush1.msra.mxu0 0.0
  %489 = vmatprep.subr.mxu0 0.0
  %490 = vmatpush1.msra.mxu0 0.0
  %491 = vmatprep.mubr.f32.mxu0 0.0
  %492 = vmatmul.mubr.f32.gmra.mrb[0].mxu0 %v425
  %v493 = vpop.f32.mrb[0].mxu0
  %v494 = vadd.f32 0.0, %v493
  %v495 = vpop.f32.mrb[0].mxu0
  %496 = vdwg.mxu0
  %v497 = vadd.f32 %v160, %v494
  %v498 = vmul.f32 %v497, 2.0
  %v499 = vsel %vm33, %v498, %v497
  %v500 = vxor.u32 %v499, 2147483648
  %v501 = vmul.f32 %v500, 1.442695
  %v502 = vpow.pop %v501
  %v503 = vadd.f32 %v502, 1.0
  %v504 = vrcp.pop %v503
  %v505 = vmul.f32 1.0, %v504
  %v506 = vmul.f32 %v505, 2.0
  %v507 = vsub.f32 %v506, 1.0
  %v508 = vsel %vm33, %v507, %v505
  %v509 = vmul.f32 %v508, %v289
  %511 = vrot.lane.b32.xlu0 %v508, 64
  %v512 = vpop.permute.xlu0 %511
  %v514 = vmul.f32 %v508, %v512
  %516 = vrot.lane.b32.xlu0 %v514, 32
  %v517 = vpop.permute.xlu0 %516
  %v519 = vadd.f32 %v509, %v517
  %v520 = vmul.f32 %v519, 2.0
  %v521 = vxor.u32 %v520, 2147483648
  %v522 = vmul.f32 %v521, 1.442695
  %v523 = vpow.pop %v522
  %v524 = vadd.f32 %v523, 1.0
  %v525 = vrcp.pop %v524
  %v526 = vmul.f32 1.0, %v525
  %v527 = vmul.f32 %v526, 2.0
  %v528 = vsub.f32 %v527, 1.0
  %530 = vrot.lane.b32.xlu0 %v528, 64
  %v531 = vpop.permute.xlu0 %530
  %v533 = vmul.f32 %v508, %v531
  %535 = vrot.lane.b32.xlu0 %v533, 32
  %v536 = vpop.permute.xlu0 %535
  %539 = vrot.lane.b32.xlu0 %v424, 64
  %v540 = vpop.permute.xlu0 %539
  %v542 = vsel %vm193, %v536, %v540
  %v544 = vsel %vm315, %v542, 0
  %546 = vmatprep.subr.mxu0 0.0
  %547 = vmatpush1.msra.mxu0 %v39
  %548 = vmatprep.subr.mxu0 0.0
  %549 = vmatpush1.msra.mxu0 %v40
  %550 = vmatprep.subr.mxu0 0.0
  %551 = vmatpush1.msra.mxu0 %v41
  %552 = vmatprep.subr.mxu0 0.0
  %553 = vmatpush1.msra.mxu0 %v42
  %554 = vmatprep.subr.mxu0 0.0
  %555 = vmatpush1.msra.mxu0 %v43
  %556 = vmatprep.subr.mxu0 0.0
  %557 = vmatpush1.msra.mxu0 %v44
  %558 = vmatprep.subr.mxu0 0.0
  %559 = vmatpush1.msra.mxu0 %v45
  %560 = vmatprep.subr.mxu0 0.0
  %561 = vmatpush1.msra.mxu0 %v46
  %562 = vmatprep.subr.mxu0 0.0
  %563 = vmatpush1.msra.mxu0 0.0
  %564 = vmatprep.subr.mxu0 0.0
  %565 = vmatpush1.msra.mxu0 0.0
  %566 = vmatprep.subr.mxu0 0.0
  %567 = vmatpush1.msra.mxu0 0.0
  %568 = vmatprep.subr.mxu0 0.0
  %569 = vmatpush1.msra.mxu0 0.0
  %570 = vmatprep.subr.mxu0 0.0
  %571 = vmatpush1.msra.mxu0 0.0
  %572 = vmatprep.subr.mxu0 0.0
  %573 = vmatpush1.msra.mxu0 0.0
  %574 = vmatprep.subr.mxu0 0.0
  %575 = vmatpush1.msra.mxu0 0.0
  %576 = vmatprep.subr.mxu0 0.0
  %577 = vmatpush1.msra.mxu0 0.0
  %578 = vmatprep.subr.mxu0 0.0
  %579 = vmatpush1.msra.mxu0 0.0
  %580 = vmatprep.subr.mxu0 0.0
  %581 = vmatpush1.msra.mxu0 0.0
  %582 = vmatprep.subr.mxu0 0.0
  %583 = vmatpush1.msra.mxu0 0.0
  %584 = vmatprep.subr.mxu0 0.0
  %585 = vmatpush1.msra.mxu0 0.0
  %586 = vmatprep.subr.mxu0 0.0
  %587 = vmatpush1.msra.mxu0 0.0
  %588 = vmatprep.subr.mxu0 0.0
  %589 = vmatpush1.msra.mxu0 0.0
  %590 = vmatprep.subr.mxu0 0.0
  %591 = vmatpush1.msra.mxu0 0.0
  %592 = vmatprep.subr.mxu0 0.0
  %593 = vmatpush1.msra.mxu0 0.0
  %594 = vmatprep.subr.mxu0 0.0
  %595 = vmatpush1.msra.mxu0 0.0
  %596 = vmatprep.subr.mxu0 0.0
  %597 = vmatpush1.msra.mxu0 0.0
  %598 = vmatprep.subr.mxu0 0.0
  %599 = vmatpush1.msra.mxu0 0.0
  %600 = vmatprep.subr.mxu0 0.0
  %601 = vmatpush1.msra.mxu0 0.0
  %602 = vmatprep.subr.mxu0 0.0
  %603 = vmatpush1.msra.mxu0 0.0
  %604 = vmatprep.subr.mxu0 0.0
  %605 = vmatpush1.msra.mxu0 0.0
  %606 = vmatprep.subr.mxu0 0.0
  %607 = vmatpush1.msra.mxu0 0.0
  %608 = vmatprep.subr.mxu0 0.0
  %609 = vmatpush1.msra.mxu0 0.0
  %610 = vmatprep.mubr.f32.mxu0 0.0
  %611 = vmatmul.mubr.f32.gmra.mrb[0].mxu0 %v544
  %v612 = vpop.f32.mrb[0].mxu0
  %v613 = vadd.f32 %v313, %v612
  %v614 = vpop.f32.mrb[0].mxu0
  %615 = vdwg.mxu0
  %v616 = vmul.f32 %v613, 2.0
  %v617 = vsel %vm33, %v616, %v613
  %v618 = vxor.u32 %v617, 2147483648
  %v619 = vmul.f32 %v618, 1.442695
  %v620 = vpow.pop %v619
  %v621 = vadd.f32 %v620, 1.0
  %v622 = vrcp.pop %v621
  %v623 = vmul.f32 1.0, %v622
  %v624 = vmul.f32 %v623, 2.0
  %v625 = vsub.f32 %v624, 1.0
  %v626 = vsel %vm33, %v625, %v623
  %v627 = vmul.f32 %v626, %v410
  %629 = vrot.lane.b32.xlu0 %v626, 64
  %v630 = vpop.permute.xlu0 %629
  %v632 = vmul.f32 %v626, %v630
  %634 = vrot.lane.b32.xlu0 %v632, 32
  %v635 = vpop.permute.xlu0 %634
  %v637 = vadd.f32 %v627, %v635
  %v638 = vmul.f32 %v637, 2.0
  %v639 = vxor.u32 %v638, 2147483648
  %v640 = vmul.f32 %v639, 1.442695
  %v641 = vpow.pop %v640
  %v642 = vadd.f32 %v641, 1.0
  %v643 = vrcp.pop %v642
  %v644 = vmul.f32 1.0, %v643
  %v645 = vmul.f32 %v644, 2.0
  %v646 = vsub.f32 %v645, 1.0
  %648 = vrot.lane.b32.xlu0 %v646, 64
  %v649 = vpop.permute.xlu0 %648
  %v651 = vmul.f32 %v626, %v649
  %v652 = vsel %vm193, %v536, 0
  %654 = vmatprep.subr.mxu0 0.0
  %655 = vmatpush1.msra.mxu0 %v34
  %656 = vmatprep.subr.mxu0 0.0
  %657 = vmatpush1.msra.mxu0 %v35
  %658 = vmatprep.subr.mxu0 0.0
  %659 = vmatpush1.msra.mxu0 %v36
  %660 = vmatprep.subr.mxu0 0.0
  %661 = vmatpush1.msra.mxu0 %v37
  %662 = vmatprep.subr.mxu0 0.0
  %663 = vmatpush1.msra.mxu0 0.0
  %664 = vmatprep.subr.mxu0 0.0
  %665 = vmatpush1.msra.mxu0 0.0
  %666 = vmatprep.subr.mxu0 0.0
  %667 = vmatpush1.msra.mxu0 0.0
  %668 = vmatprep.subr.mxu0 0.0
  %669 = vmatpush1.msra.mxu0 0.0
  %670 = vmatprep.subr.mxu0 0.0
  %671 = vmatpush1.msra.mxu0 0.0
  %672 = vmatprep.subr.mxu0 0.0
  %673 = vmatpush1.msra.mxu0 0.0
  %674 = vmatprep.subr.mxu0 0.0
  %675 = vmatpush1.msra.mxu0 0.0
  %676 = vmatprep.subr.mxu0 0.0
  %677 = vmatpush1.msra.mxu0 0.0
  %678 = vmatprep.subr.mxu0 0.0
  %679 = vmatpush1.msra.mxu0 0.0
  %680 = vmatprep.subr.mxu0 0.0
  %681 = vmatpush1.msra.mxu0 0.0
  %682 = vmatprep.subr.mxu0 0.0
  %683 = vmatpush1.msra.mxu0 0.0
  %684 = vmatprep.subr.mxu0 0.0
  %685 = vmatpush1.msra.mxu0 0.0
  %686 = vmatprep.subr.mxu0 0.0
  %687 = vmatpush1.msra.mxu0 0.0
  %688 = vmatprep.subr.mxu0 0.0
  %689 = vmatpush1.msra.mxu0 0.0
  %690 = vmatprep.subr.mxu0 0.0
  %691 = vmatpush1.msra.mxu0 0.0
  %692 = vmatprep.subr.mxu0 0.0
  %693 = vmatpush1.msra.mxu0 0.0
  %694 = vmatprep.subr.mxu0 0.0
  %695 = vmatpush1.msra.mxu0 0.0
  %696 = vmatprep.subr.mxu0 0.0
  %697 = vmatpush1.msra.mxu0 0.0
  %698 = vmatprep.subr.mxu0 0.0
  %699 = vmatpush1.msra.mxu0 0.0
  %700 = vmatprep.subr.mxu0 0.0
  %701 = vmatpush1.msra.mxu0 0.0
  %702 = vmatprep.subr.mxu0 0.0
  %703 = vmatpush1.msra.mxu0 0.0
  %704 = vmatprep.subr.mxu0 0.0
  %705 = vmatpush1.msra.mxu0 0.0
  %706 = vmatprep.subr.mxu0 0.0
  %707 = vmatpush1.msra.mxu0 0.0
  %708 = vmatprep.subr.mxu0 0.0
  %709 = vmatpush1.msra.mxu0 0.0
  %710 = vmatprep.subr.mxu0 0.0
  %711 = vmatpush1.msra.mxu0 0.0
  %712 = vmatprep.subr.mxu0 0.0
  %713 = vmatpush1.msra.mxu0 0.0
  %714 = vmatprep.subr.mxu0 0.0
  %715 = vmatpush1.msra.mxu0 0.0
  %716 = vmatprep.subr.mxu0 0.0
  %717 = vmatpush1.msra.mxu0 0.0
  %718 = vmatprep.mubr.f32.mxu0 0.0
  %719 = vmatmul.mubr.f32.gmra.mrb[0].mxu0 %v652
  %v720 = vpop.f32.mrb[0].mxu0
  %v721 = vadd.f32 0.0, %v720
  %v722 = vpop.f32.mrb[0].mxu0
  %723 = vdwg.mxu0
  %v724 = vadd.f32 %v165, %v721
  %v725 = vmul.f32 %v724, 2.0
  %v726 = vsel %vm33, %v725, %v724
  %v727 = vxor.u32 %v726, 2147483648
  %v728 = vmul.f32 %v727, 1.442695
  %v729 = vpow.pop %v728
  %v730 = vadd.f32 %v729, 1.0
  %v731 = vrcp.pop %v730
  %v732 = vmul.f32 1.0, %v731
  %v733 = vmul.f32 %v732, 2.0
  %v734 = vsub.f32 %v733, 1.0
  %v735 = vsel %vm33, %v734, %v732
  %v736 = vmul.f32 %v735, %v519
  %738 = vrot.lane.b32.xlu0 %v735, 64
  %v739 = vpop.permute.xlu0 %738
  %v741 = vmul.f32 %v735, %v739
  %743 = vrot.lane.b32.xlu0 %v741, 32
  %v744 = vpop.permute.xlu0 %743
  %v746 = vadd.f32 %v736, %v744
  %v747 = vmul.f32 %v746, 2.0
  %v748 = vxor.u32 %v747, 2147483648
  %v749 = vmul.f32 %v748, 1.442695
  %v750 = vpow.pop %v749
  %v751 = vadd.f32 %v750, 1.0
  %v752 = vrcp.pop %v751
  %v753 = vmul.f32 1.0, %v752
  %v754 = vmul.f32 %v753, 2.0
  %v755 = vsub.f32 %v754, 1.0
  %757 = vrot.lane.b32.xlu0 %v755, 64
  %v758 = vpop.permute.xlu0 %757
  %v760 = vmul.f32 %v735, %v758
  %762 = vrot.lane.b32.xlu0 %v760, 32
  %v763 = vpop.permute.xlu0 %762
  %766 = vrot.lane.b32.xlu0 %v651, 64
  %v767 = vpop.permute.xlu0 %766
  %v769 = vsel %vm193, %v763, %v767
  %v771 = vsel %vm315, %v769, 0
  %773 = vmatprep.subr.mxu0 0.0
  %774 = vmatpush1.msra.mxu0 %v39
  %775 = vmatprep.subr.mxu0 0.0
  %776 = vmatpush1.msra.mxu0 %v40
  %777 = vmatprep.subr.mxu0 0.0
  %778 = vmatpush1.msra.mxu0 %v41
  %779 = vmatprep.subr.mxu0 0.0
  %780 = vmatpush1.msra.mxu0 %v42
  %781 = vmatprep.subr.mxu0 0.0
  %782 = vmatpush1.msra.mxu0 %v43
  %783 = vmatprep.subr.mxu0 0.0
  %784 = vmatpush1.msra.mxu0 %v44
  %785 = vmatprep.subr.mxu0 0.0
  %786 = vmatpush1.msra.mxu0 %v45
  %787 = vmatprep.subr.mxu0 0.0
  %788 = vmatpush1.msra.mxu0 %v46
  %789 = vmatprep.subr.mxu0 0.0
  %790 = vmatpush1.msra.mxu0 0.0
  %791 = vmatprep.subr.mxu0 0.0
  %792 = vmatpush1.msra.mxu0 0.0
  %793 = vmatprep.subr.mxu0 0.0
  %794 = vmatpush1.msra.mxu0 0.0
  %795 = vmatprep.subr.mxu0 0.0
  %796 = vmatpush1.msra.mxu0 0.0
  %797 = vmatprep.subr.mxu0 0.0
  %798 = vmatpush1.msra.mxu0 0.0
  %799 = vmatprep.subr.mxu0 0.0
  %800 = vmatpush1.msra.mxu0 0.0
  %801 = vmatprep.subr.mxu0 0.0
  %802 = vmatpush1.msra.mxu0 0.0
  %803 = vmatprep.subr.mxu0 0.0
  %804 = vmatpush1.msra.mxu0 0.0
  %805 = vmatprep.subr.mxu0 0.0
  %806 = vmatpush1.msra.mxu0 0.0
  %807 = vmatprep.subr.mxu0 0.0
  %808 = vmatpush1.msra.mxu0 0.0
  %809 = vmatprep.subr.mxu0 0.0
  %810 = vmatpush1.msra.mxu0 0.0
  %811 = vmatprep.subr.mxu0 0.0
  %812 = vmatpush1.msra.mxu0 0.0
  %813 = vmatprep.subr.mxu0 0.0
  %814 = vmatpush1.msra.mxu0 0.0
  %815 = vmatprep.subr.mxu0 0.0
  %816 = vmatpush1.msra.mxu0 0.0
  %817 = vmatprep.subr.mxu0 0.0
  %818 = vmatpush1.msra.mxu0 0.0
  %819 = vmatprep.subr.mxu0 0.0
  %820 = vmatpush1.msra.mxu0 0.0
  %821 = vmatprep.subr.mxu0 0.0
  %822 = vmatpush1.msra.mxu0 0.0
  %823 = vmatprep.subr.mxu0 0.0
  %824 = vmatpush1.msra.mxu0 0.0
  %825 = vmatprep.subr.mxu0 0.0
  %826 = vmatpush1.msra.mxu0 0.0
  %827 = vmatprep.subr.mxu0 0.0
  %828 = vmatpush1.msra.mxu0 0.0
  %829 = vmatprep.subr.mxu0 0.0
  %830 = vmatpush1.msra.mxu0 0.0
  %831 = vmatprep.subr.mxu0 0.0
  %832 = vmatpush1.msra.mxu0 0.0
  %833 = vmatprep.subr.mxu0 0.0
  %834 = vmatpush1.msra.mxu0 0.0
  %835 = vmatprep.subr.mxu0 0.0
  %836 = vmatpush1.msra.mxu0 0.0
  %837 = vmatprep.mubr.f32.mxu0 0.0
  %838 = vmatmul.mubr.f32.gmra.mrb[0].mxu0 %v771
  %v839 = vpop.f32.mrb[0].mxu0
  %v840 = vadd.f32 %v313, %v839
  %v841 = vpop.f32.mrb[0].mxu0
  %842 = vdwg.mxu0
  %v843 = vmul.f32 %v840, 2.0
  %v844 = vsel %vm33, %v843, %v840
  %v845 = vxor.u32 %v844, 2147483648
  %v846 = vmul.f32 %v845, 1.442695
  %v847 = vpow.pop %v846
  %v848 = vadd.f32 %v847, 1.0
  %v849 = vrcp.pop %v848
  %v850 = vmul.f32 1.0, %v849
  %v851 = vmul.f32 %v850, 2.0
  %v852 = vsub.f32 %v851, 1.0
  %v853 = vsel %vm33, %v852, %v850
  %v854 = vmul.f32 %v853, %v637
  %856 = vrot.lane.b32.xlu0 %v853, 64
  %v857 = vpop.permute.xlu0 %856
  %v859 = vmul.f32 %v853, %v857
  %861 = vrot.lane.b32.xlu0 %v859, 32
  %v862 = vpop.permute.xlu0 %861
  %v864 = vadd.f32 %v854, %v862
  %v865 = vmul.f32 %v864, 2.0
  %v866 = vxor.u32 %v865, 2147483648
  %v867 = vmul.f32 %v866, 1.442695
  %v868 = vpow.pop %v867
  %v869 = vadd.f32 %v868, 1.0
  %v870 = vrcp.pop %v869
  %v871 = vmul.f32 1.0, %v870
  %v872 = vmul.f32 %v871, 2.0
  %v873 = vsub.f32 %v872, 1.0
  %875 = vrot.lane.b32.xlu0 %v873, 64
  %v876 = vpop.permute.xlu0 %875
  %v878 = vmul.f32 %v853, %v876
  %v879 = vsel %vm193, %v763, 0
  %881 = vmatprep.subr.mxu0 0.0
  %882 = vmatpush1.msra.mxu0 %v34
  %883 = vmatprep.subr.mxu0 0.0
  %884 = vmatpush1.msra.mxu0 %v35
  %885 = vmatprep.subr.mxu0 0.0
  %886 = vmatpush1.msra.mxu0 %v36
  %887 = vmatprep.subr.mxu0 0.0
  %888 = vmatpush1.msra.mxu0 %v37
  %889 = vmatprep.subr.mxu0 0.0
  %890 = vmatpush1.msra.mxu0 0.0
  %891 = vmatprep.subr.mxu0 0.0
  %892 = vmatpush1.msra.mxu0 0.0
  %893 = vmatprep.subr.mxu0 0.0
  %894 = vmatpush1.msra.mxu0 0.0
  %895 = vmatprep.subr.mxu0 0.0
  %896 = vmatpush1.msra.mxu0 0.0
  %897 = vmatprep.subr.mxu0 0.0
  %898 = vmatpush1.msra.mxu0 0.0
  %899 = vmatprep.subr.mxu0 0.0
  %900 = vmatpush1.msra.mxu0 0.0
  %901 = vmatprep.subr.mxu0 0.0
  %902 = vmatpush1.msra.mxu0 0.0
  %903 = vmatprep.subr.mxu0 0.0
  %904 = vmatpush1.msra.mxu0 0.0
  %905 = vmatprep.subr.mxu0 0.0
  %906 = vmatpush1.msra.mxu0 0.0
  %907 = vmatprep.subr.mxu0 0.0
  %908 = vmatpush1.msra.mxu0 0.0
  %909 = vmatprep.subr.mxu0 0.0
  %910 = vmatpush1.msra.mxu0 0.0
  %911 = vmatprep.subr.mxu0 0.0
  %912 = vmatpush1.msra.mxu0 0.0
  %913 = vmatprep.subr.mxu0 0.0
  %914 = vmatpush1.msra.mxu0 0.0
  %915 = vmatprep.subr.mxu0 0.0
  %916 = vmatpush1.msra.mxu0 0.0
  %917 = vmatprep.subr.mxu0 0.0
  %918 = vmatpush1.msra.mxu0 0.0
  %919 = vmatprep.subr.mxu0 0.0
  %920 = vmatpush1.msra.mxu0 0.0
  %921 = vmatprep.subr.mxu0 0.0
  %922 = vmatpush1.msra.mxu0 0.0
  %923 = vmatprep.subr.mxu0 0.0
  %924 = vmatpush1.msra.mxu0 0.0
  %925 = vmatprep.subr.mxu0 0.0
  %926 = vmatpush1.msra.mxu0 0.0
  %927 = vmatprep.subr.mxu0 0.0
  %928 = vmatpush1.msra.mxu0 0.0
  %929 = vmatprep.subr.mxu0 0.0
  %930 = vmatpush1.msra.mxu0 0.0
  %931 = vmatprep.subr.mxu0 0.0
  %932 = vmatpush1.msra.mxu0 0.0
  %933 = vmatprep.subr.mxu0 0.0
  %934 = vmatpush1.msra.mxu0 0.0
  %935 = vmatprep.subr.mxu0 0.0
  %936 = vmatpush1.msra.mxu0 0.0
  %937 = vmatprep.subr.mxu0 0.0
  %938 = vmatpush1.msra.mxu0 0.0
  %939 = vmatprep.subr.mxu0 0.0
  %940 = vmatpush1.msra.mxu0 0.0
  %941 = vmatprep.subr.mxu0 0.0
  %942 = vmatpush1.msra.mxu0 0.0
  %943 = vmatprep.subr.mxu0 0.0
  %944 = vmatpush1.msra.mxu0 0.0
  %945 = vmatprep.mubr.f32.mxu0 0.0
  %946 = vmatmul.mubr.f32.gmra.mrb[0].mxu0 %v879
  %v947 = vpop.f32.mrb[0].mxu0
  %v948 = vadd.f32 0.0, %v947
  %v949 = vpop.f32.mrb[0].mxu0
  %950 = vdwg.mxu0
  %v951 = vadd.f32 %v170, %v948
  %v952 = vmul.f32 %v951, 2.0
  %v953 = vsel %vm33, %v952, %v951
  %v954 = vxor.u32 %v953, 2147483648
  %v955 = vmul.f32 %v954, 1.442695
  %v956 = vpow.pop %v955
  %v957 = vadd.f32 %v956, 1.0
  %v958 = vrcp.pop %v957
  %v959 = vmul.f32 1.0, %v958
  %v960 = vmul.f32 %v959, 2.0
  %v961 = vsub.f32 %v960, 1.0
  %v962 = vsel %vm33, %v961, %v959
  %v963 = vmul.f32 %v962, %v746
  %965 = vrot.lane.b32.xlu0 %v962, 64
  %v966 = vpop.permute.xlu0 %965
  %v968 = vmul.f32 %v962, %v966
  %970 = vrot.lane.b32.xlu0 %v968, 32
  %v971 = vpop.permute.xlu0 %970
  %v973 = vadd.f32 %v963, %v971
  %v974 = vmul.f32 %v973, 2.0
  %v975 = vxor.u32 %v974, 2147483648
  %v976 = vmul.f32 %v975, 1.442695
  %v977 = vpow.pop %v976
  %v978 = vadd.f32 %v977, 1.0
  %v979 = vrcp.pop %v978
  %v980 = vmul.f32 1.0, %v979
  %v981 = vmul.f32 %v980, 2.0
  %v982 = vsub.f32 %v981, 1.0
  %984 = vrot.lane.b32.xlu0 %v982, 64
  %v985 = vpop.permute.xlu0 %984
  %v987 = vmul.f32 %v962, %v985
  %989 = vrot.lane.b32.xlu0 %v987, 32
  %v990 = vpop.permute.xlu0 %989
  %993 = vrot.lane.b32.xlu0 %v878, 64
  %v994 = vpop.permute.xlu0 %993
  %v996 = vsel %vm193, %v990, %v994
  %v998 = vsel %vm315, %v996, 0
  %1000 = vmatprep.subr.mxu0 0.0
  %1001 = vmatpush1.msra.mxu0 %v39
  %1002 = vmatprep.subr.mxu0 0.0
  %1003 = vmatpush1.msra.mxu0 %v40
  %1004 = vmatprep.subr.mxu0 0.0
  %1005 = vmatpush1.msra.mxu0 %v41
  %1006 = vmatprep.subr.mxu0 0.0
  %1007 = vmatpush1.msra.mxu0 %v42
  %1008 = vmatprep.subr.mxu0 0.0
  %1009 = vmatpush1.msra.mxu0 %v43
  %1010 = vmatprep.subr.mxu0 0.0
  %1011 = vmatpush1.msra.mxu0 %v44
  %1012 = vmatprep.subr.mxu0 0.0
  %1013 = vmatpush1.msra.mxu0 %v45
  %1014 = vmatprep.subr.mxu0 0.0
  %1015 = vmatpush1.msra.mxu0 %v46
  %1016 = vmatprep.subr.mxu0 0.0
  %1017 = vmatpush1.msra.mxu0 0.0
  %1018 = vmatprep.subr.mxu0 0.0
  %1019 = vmatpush1.msra.mxu0 0.0
  %1020 = vmatprep.subr.mxu0 0.0
  %1021 = vmatpush1.msra.mxu0 0.0
  %1022 = vmatprep.subr.mxu0 0.0
  %1023 = vmatpush1.msra.mxu0 0.0
  %1024 = vmatprep.subr.mxu0 0.0
  %1025 = vmatpush1.msra.mxu0 0.0
  %1026 = vmatprep.subr.mxu0 0.0
  %1027 = vmatpush1.msra.mxu0 0.0
  %1028 = vmatprep.subr.mxu0 0.0
  %1029 = vmatpush1.msra.mxu0 0.0
  %1030 = vmatprep.subr.mxu0 0.0
  %1031 = vmatpush1.msra.mxu0 0.0
  %1032 = vmatprep.subr.mxu0 0.0
  %1033 = vmatpush1.msra.mxu0 0.0
  %1034 = vmatprep.subr.mxu0 0.0
  %1035 = vmatpush1.msra.mxu0 0.0
  %1036 = vmatprep.subr.mxu0 0.0
  %1037 = vmatpush1.msra.mxu0 0.0
  %1038 = vmatprep.subr.mxu0 0.0
  %1039 = vmatpush1.msra.mxu0 0.0
  %1040 = vmatprep.subr.mxu0 0.0
  %1041 = vmatpush1.msra.mxu0 0.0
  %1042 = vmatprep.subr.mxu0 0.0
  %1043 = vmatpush1.msra.mxu0 0.0
  %1044 = vmatprep.subr.mxu0 0.0
  %1045 = vmatpush1.msra.mxu0 0.0
  %1046 = vmatprep.subr.mxu0 0.0
  %1047 = vmatpush1.msra.mxu0 0.0
  %1048 = vmatprep.subr.mxu0 0.0
  %1049 = vmatpush1.msra.mxu0 0.0
  %1050 = vmatprep.subr.mxu0 0.0
  %1051 = vmatpush1.msra.mxu0 0.0
  %1052 = vmatprep.subr.mxu0 0.0
  %1053 = vmatpush1.msra.mxu0 0.0
  %1054 = vmatprep.subr.mxu0 0.0
  %1055 = vmatpush1.msra.mxu0 0.0
  %1056 = vmatprep.subr.mxu0 0.0
  %1057 = vmatpush1.msra.mxu0 0.0
  %1058 = vmatprep.subr.mxu0 0.0
  %1059 = vmatpush1.msra.mxu0 0.0
  %1060 = vmatprep.subr.mxu0 0.0
  %1061 = vmatpush1.msra.mxu0 0.0
  %1062 = vmatprep.subr.mxu0 0.0
  %1063 = vmatpush1.msra.mxu0 0.0
  %1064 = vmatprep.mubr.f32.mxu0 0.0
  %1065 = vmatmul.mubr.f32.gmra.mrb[0].mxu0 %v998
  %v1066 = vpop.f32.mrb[0].mxu0
  %v1067 = vadd.f32 %v313, %v1066
  %v1068 = vpop.f32.mrb[0].mxu0
  %1069 = vdwg.mxu0
  %v1070 = vmul.f32 %v1067, 2.0
  %v1071 = vsel %vm33, %v1070, %v1067
  %v1072 = vxor.u32 %v1071, 2147483648
  %v1073 = vmul.f32 %v1072, 1.442695
  %v1074 = vpow.pop %v1073
  %v1075 = vadd.f32 %v1074, 1.0
  %v1076 = vrcp.pop %v1075
  %v1077 = vmul.f32 1.0, %v1076
  %v1078 = vmul.f32 %v1077, 2.0
  %v1079 = vsub.f32 %v1078, 1.0
  %v1080 = vsel %vm33, %v1079, %v1077
  %v1081 = vmul.f32 %v1080, %v864
  %1083 = vrot.lane.b32.xlu0 %v1080, 64
  %v1084 = vpop.permute.xlu0 %1083
  %v1086 = vmul.f32 %v1080, %v1084
  %1088 = vrot.lane.b32.xlu0 %v1086, 32
  %v1089 = vpop.permute.xlu0 %1088
  %v1091 = vadd.f32 %v1081, %v1089
  %v1092 = vmul.f32 %v1091, 2.0
  %v1093 = vxor.u32 %v1092, 2147483648
  %v1094 = vmul.f32 %v1093, 1.442695
  %v1095 = vpow.pop %v1094
  %v1096 = vadd.f32 %v1095, 1.0
  %v1097 = vrcp.pop %v1096
  %v1098 = vmul.f32 1.0, %v1097
  %v1099 = vmul.f32 %v1098, 2.0
  %v1100 = vsub.f32 %v1099, 1.0
  %1102 = vrot.lane.b32.xlu0 %v1100, 64
  %v1103 = vpop.permute.xlu0 %1102
  %v1105 = vmul.f32 %v1080, %v1103
  %v1106 = vsel %vm193, %v990, 0
  %1108 = vmatprep.subr.mxu0 0.0
  %1109 = vmatpush1.msra.mxu0 %v34
  %1110 = vmatprep.subr.mxu0 0.0
  %1111 = vmatpush1.msra.mxu0 %v35
  %1112 = vmatprep.subr.mxu0 0.0
  %1113 = vmatpush1.msra.mxu0 %v36
  %1114 = vmatprep.subr.mxu0 0.0
  %1115 = vmatpush1.msra.mxu0 %v37
  %1116 = vmatprep.subr.mxu0 0.0
  %1117 = vmatpush1.msra.mxu0 0.0
  %1118 = vmatprep.subr.mxu0 0.0
  %1119 = vmatpush1.msra.mxu0 0.0
  %1120 = vmatprep.subr.mxu0 0.0
  %1121 = vmatpush1.msra.mxu0 0.0
  %1122 = vmatprep.subr.mxu0 0.0
  %1123 = vmatpush1.msra.mxu0 0.0
  %1124 = vmatprep.subr.mxu0 0.0
  %1125 = vmatpush1.msra.mxu0 0.0
  %1126 = vmatprep.subr.mxu0 0.0
  %1127 = vmatpush1.msra.mxu0 0.0
  %1128 = vmatprep.subr.mxu0 0.0
  %1129 = vmatpush1.msra.mxu0 0.0
  %1130 = vmatprep.subr.mxu0 0.0
  %1131 = vmatpush1.msra.mxu0 0.0
  %1132 = vmatprep.subr.mxu0 0.0
  %1133 = vmatpush1.msra.mxu0 0.0
  %1134 = vmatprep.subr.mxu0 0.0
  %1135 = vmatpush1.msra.mxu0 0.0
  %1136 = vmatprep.subr.mxu0 0.0
  %1137 = vmatpush1.msra.mxu0 0.0
  %1138 = vmatprep.subr.mxu0 0.0
  %1139 = vmatpush1.msra.mxu0 0.0
  %1140 = vmatprep.subr.mxu0 0.0
  %1141 = vmatpush1.msra.mxu0 0.0
  %1142 = vmatprep.subr.mxu0 0.0
  %1143 = vmatpush1.msra.mxu0 0.0
  %1144 = vmatprep.subr.mxu0 0.0
  %1145 = vmatpush1.msra.mxu0 0.0
  %1146 = vmatprep.subr.mxu0 0.0
  %1147 = vmatpush1.msra.mxu0 0.0
  %1148 = vmatprep.subr.mxu0 0.0
  %1149 = vmatpush1.msra.mxu0 0.0
  %1150 = vmatprep.subr.mxu0 0.0
  %1151 = vmatpush1.msra.mxu0 0.0
  %1152 = vmatprep.subr.mxu0 0.0
  %1153 = vmatpush1.msra.mxu0 0.0
  %1154 = vmatprep.subr.mxu0 0.0
  %1155 = vmatpush1.msra.mxu0 0.0
  %1156 = vmatprep.subr.mxu0 0.0
  %1157 = vmatpush1.msra.mxu0 0.0
  %1158 = vmatprep.subr.mxu0 0.0
  %1159 = vmatpush1.msra.mxu0 0.0
  %1160 = vmatprep.subr.mxu0 0.0
  %1161 = vmatpush1.msra.mxu0 0.0
  %1162 = vmatprep.subr.mxu0 0.0
  %1163 = vmatpush1.msra.mxu0 0.0
  %1164 = vmatprep.subr.mxu0 0.0
  %1165 = vmatpush1.msra.mxu0 0.0
  %1166 = vmatprep.subr.mxu0 0.0
  %1167 = vmatpush1.msra.mxu0 0.0
  %1168 = vmatprep.subr.mxu0 0.0
  %1169 = vmatpush1.msra.mxu0 0.0
  %1170 = vmatprep.subr.mxu0 0.0
  %1171 = vmatpush1.msra.mxu0 0.0
  %1172 = vmatprep.mubr.f32.mxu0 0.0
  %1173 = vmatmul.mubr.f32.gmra.mrb[0].mxu0 %v1106
  %v1174 = vpop.f32.mrb[0].mxu0
  %v1175 = vadd.f32 0.0, %v1174
  %v1176 = vpop.f32.mrb[0].mxu0
  %1177 = vdwg.mxu0
  %v1178 = vadd.f32 %v175, %v1175
  %v1179 = vmul.f32 %v1178, 2.0
  %v1180 = vsel %vm33, %v1179, %v1178
  %v1181 = vxor.u32 %v1180, 2147483648
  %v1182 = vmul.f32 %v1181, 1.442695
  %v1183 = vpow.pop %v1182
  %v1184 = vadd.f32 %v1183, 1.0
  %v1185 = vrcp.pop %v1184
  %v1186 = vmul.f32 1.0, %v1185
  %v1187 = vmul.f32 %v1186, 2.0
  %v1188 = vsub.f32 %v1187, 1.0
  %v1189 = vsel %vm33, %v1188, %v1186
  %v1190 = vmul.f32 %v1189, %v973
  %1192 = vrot.lane.b32.xlu0 %v1189, 64
  %v1193 = vpop.permute.xlu0 %1192
  %v1195 = vmul.f32 %v1189, %v1193
  %1197 = vrot.lane.b32.xlu0 %v1195, 32
  %v1198 = vpop.permute.xlu0 %1197
  %v1200 = vadd.f32 %v1190, %v1198
  %v1201 = vmul.f32 %v1200, 2.0
  %v1202 = vxor.u32 %v1201, 2147483648
  %v1203 = vmul.f32 %v1202, 1.442695
  %v1204 = vpow.pop %v1203
  %v1205 = vadd.f32 %v1204, 1.0
  %v1206 = vrcp.pop %v1205
  %v1207 = vmul.f32 1.0, %v1206
  %v1208 = vmul.f32 %v1207, 2.0
  %v1209 = vsub.f32 %v1208, 1.0
  %1211 = vrot.lane.b32.xlu0 %v1209, 64
  %v1212 = vpop.permute.xlu0 %1211
  %v1214 = vmul.f32 %v1189, %v1212
  %1216 = vrot.lane.b32.xlu0 %v1214, 32
  %v1217 = vpop.permute.xlu0 %1216
  %1220 = vrot.lane.b32.xlu0 %v1105, 64
  %v1221 = vpop.permute.xlu0 %1220
  %v1223 = vsel %vm193, %v1217, %v1221
  %v1225 = vsel %vm315, %v1223, 0
  %1227 = vmatprep.subr.mxu0 0.0
  %1228 = vmatpush1.msra.mxu0 %v39
  %1229 = vmatprep.subr.mxu0 0.0
  %1230 = vmatpush1.msra.mxu0 %v40
  %1231 = vmatprep.subr.mxu0 0.0
  %1232 = vmatpush1.msra.mxu0 %v41
  %1233 = vmatprep.subr.mxu0 0.0
  %1234 = vmatpush1.msra.mxu0 %v42
  %1235 = vmatprep.subr.mxu0 0.0
  %1236 = vmatpush1.msra.mxu0 %v43
  %1237 = vmatprep.subr.mxu0 0.0
  %1238 = vmatpush1.msra.mxu0 %v44
  %1239 = vmatprep.subr.mxu0 0.0
  %1240 = vmatpush1.msra.mxu0 %v45
  %1241 = vmatprep.subr.mxu0 0.0
  %1242 = vmatpush1.msra.mxu0 %v46
  %1243 = vmatprep.subr.mxu0 0.0
  %1244 = vmatpush1.msra.mxu0 0.0
  %1245 = vmatprep.subr.mxu0 0.0
  %1246 = vmatpush1.msra.mxu0 0.0
  %1247 = vmatprep.subr.mxu0 0.0
  %1248 = vmatpush1.msra.mxu0 0.0
  %1249 = vmatprep.subr.mxu0 0.0
  %1250 = vmatpush1.msra.mxu0 0.0
  %1251 = vmatprep.subr.mxu0 0.0
  %1252 = vmatpush1.msra.mxu0 0.0
  %1253 = vmatprep.subr.mxu0 0.0
  %1254 = vmatpush1.msra.mxu0 0.0
  %1255 = vmatprep.subr.mxu0 0.0
  %1256 = vmatpush1.msra.mxu0 0.0
  %1257 = vmatprep.subr.mxu0 0.0
  %1258 = vmatpush1.msra.mxu0 0.0
  %1259 = vmatprep.subr.mxu0 0.0
  %1260 = vmatpush1.msra.mxu0 0.0
  %1261 = vmatprep.subr.mxu0 0.0
  %1262 = vmatpush1.msra.mxu0 0.0
  %1263 = vmatprep.subr.mxu0 0.0
  %1264 = vmatpush1.msra.mxu0 0.0
  %1265 = vmatprep.subr.mxu0 0.0
  %1266 = vmatpush1.msra.mxu0 0.0
  %1267 = vmatprep.subr.mxu0 0.0
  %1268 = vmatpush1.msra.mxu0 0.0
  %1269 = vmatprep.subr.mxu0 0.0
  %1270 = vmatpush1.msra.mxu0 0.0
  %1271 = vmatprep.subr.mxu0 0.0
  %1272 = vmatpush1.msra.mxu0 0.0
  %1273 = vmatprep.subr.mxu0 0.0
  %1274 = vmatpush1.msra.mxu0 0.0
  %1275 = vmatprep.subr.mxu0 0.0
  %1276 = vmatpush1.msra.mxu0 0.0
  %1277 = vmatprep.subr.mxu0 0.0
  %1278 = vmatpush1.msra.mxu0 0.0
  %1279 = vmatprep.subr.mxu0 0.0
  %1280 = vmatpush1.msra.mxu0 0.0
  %1281 = vmatprep.subr.mxu0 0.0
  %1282 = vmatpush1.msra.mxu0 0.0
  %1283 = vmatprep.subr.mxu0 0.0
  %1284 = vmatpush1.msra.mxu0 0.0
  %1285 = vmatprep.subr.mxu0 0.0
  %1286 = vmatpush1.msra.mxu0 0.0
  %1287 = vmatprep.subr.mxu0 0.0
  %1288 = vmatpush1.msra.mxu0 0.0
  %1289 = vmatprep.subr.mxu0 0.0
  %1290 = vmatpush1.msra.mxu0 0.0
  %1291 = vmatprep.mubr.f32.mxu0 0.0
  %1292 = vmatmul.mubr.f32.gmra.mrb[0].mxu0 %v1225
  %v1293 = vpop.f32.mrb[0].mxu0
  %v1294 = vadd.f32 %v313, %v1293
  %v1295 = vpop.f32.mrb[0].mxu0
  %1296 = vdwg.mxu0
  %v1297 = vmul.f32 %v1294, 2.0
  %v1298 = vsel %vm33, %v1297, %v1294
  %v1299 = vxor.u32 %v1298, 2147483648
  %v1300 = vmul.f32 %v1299, 1.442695
  %v1301 = vpow.pop %v1300
  %v1302 = vadd.f32 %v1301, 1.0
  %v1303 = vrcp.pop %v1302
  %v1304 = vmul.f32 1.0, %v1303
  %v1305 = vmul.f32 %v1304, 2.0
  %v1306 = vsub.f32 %v1305, 1.0
  %v1307 = vsel %vm33, %v1306, %v1304
  %v1308 = vmul.f32 %v1307, %v1091
  %1310 = vrot.lane.b32.xlu0 %v1307, 64
  %v1311 = vpop.permute.xlu0 %1310
  %v1313 = vmul.f32 %v1307, %v1311
  %1315 = vrot.lane.b32.xlu0 %v1313, 32
  %v1316 = vpop.permute.xlu0 %1315
  %v1318 = vadd.f32 %v1308, %v1316
  %v1319 = vmul.f32 %v1318, 2.0
  %v1320 = vxor.u32 %v1319, 2147483648
  %v1321 = vmul.f32 %v1320, 1.442695
  %v1322 = vpow.pop %v1321
  %v1323 = vadd.f32 %v1322, 1.0
  %v1324 = vrcp.pop %v1323
  %v1325 = vmul.f32 1.0, %v1324
  %v1326 = vmul.f32 %v1325, 2.0
  %v1327 = vsub.f32 %v1326, 1.0
  %1329 = vrot.lane.b32.xlu0 %v1327, 64
  %v1330 = vpop.permute.xlu0 %1329
  %v1332 = vmul.f32 %v1307, %v1330
  %v1333 = vsel %vm193, %v1217, 0
  %1335 = vmatprep.subr.mxu0 0.0
  %1336 = vmatpush1.msra.mxu0 %v34
  %1337 = vmatprep.subr.mxu0 0.0
  %1338 = vmatpush1.msra.mxu0 %v35
  %1339 = vmatprep.subr.mxu0 0.0
  %1340 = vmatpush1.msra.mxu0 %v36
  %1341 = vmatprep.subr.mxu0 0.0
  %1342 = vmatpush1.msra.mxu0 %v37
  %1343 = vmatprep.subr.mxu0 0.0
  %1344 = vmatpush1.msra.mxu0 0.0
  %1345 = vmatprep.subr.mxu0 0.0
  %1346 = vmatpush1.msra.mxu0 0.0
  %1347 = vmatprep.subr.mxu0 0.0
  %1348 = vmatpush1.msra.mxu0 0.0
  %1349 = vmatprep.subr.mxu0 0.0
  %1350 = vmatpush1.msra.mxu0 0.0
  %1351 = vmatprep.subr.mxu0 0.0
  %1352 = vmatpush1.msra.mxu0 0.0
  %1353 = vmatprep.subr.mxu0 0.0
  %1354 = vmatpush1.msra.mxu0 0.0
  %1355 = vmatprep.subr.mxu0 0.0
  %1356 = vmatpush1.msra.mxu0 0.0
  %1357 = vmatprep.subr.mxu0 0.0
  %1358 = vmatpush1.msra.mxu0 0.0
  %1359 = vmatprep.subr.mxu0 0.0
  %1360 = vmatpush1.msra.mxu0 0.0
  %1361 = vmatprep.subr.mxu0 0.0
  %1362 = vmatpush1.msra.mxu0 0.0
  %1363 = vmatprep.subr.mxu0 0.0
  %1364 = vmatpush1.msra.mxu0 0.0
  %1365 = vmatprep.subr.mxu0 0.0
  %1366 = vmatpush1.msra.mxu0 0.0
  %1367 = vmatprep.subr.mxu0 0.0
  %1368 = vmatpush1.msra.mxu0 0.0
  %1369 = vmatprep.subr.mxu0 0.0
  %1370 = vmatpush1.msra.mxu0 0.0
  %1371 = vmatprep.subr.mxu0 0.0
  %1372 = vmatpush1.msra.mxu0 0.0
  %1373 = vmatprep.subr.mxu0 0.0
  %1374 = vmatpush1.msra.mxu0 0.0
  %1375 = vmatprep.subr.mxu0 0.0
  %1376 = vmatpush1.msra.mxu0 0.0
  %1377 = vmatprep.subr.mxu0 0.0
  %1378 = vmatpush1.msra.mxu0 0.0
  %1379 = vmatprep.subr.mxu0 0.0
  %1380 = vmatpush1.msra.mxu0 0.0
  %1381 = vmatprep.subr.mxu0 0.0
  %1382 = vmatpush1.msra.mxu0 0.0
  %1383 = vmatprep.subr.mxu0 0.0
  %1384 = vmatpush1.msra.mxu0 0.0
  %1385 = vmatprep.subr.mxu0 0.0
  %1386 = vmatpush1.msra.mxu0 0.0
  %1387 = vmatprep.subr.mxu0 0.0
  %1388 = vmatpush1.msra.mxu0 0.0
  %1389 = vmatprep.subr.mxu0 0.0
  %1390 = vmatpush1.msra.mxu0 0.0
  %1391 = vmatprep.subr.mxu0 0.0
  %1392 = vmatpush1.msra.mxu0 0.0
  %1393 = vmatprep.subr.mxu0 0.0
  %1394 = vmatpush1.msra.mxu0 0.0
  %1395 = vmatprep.subr.mxu0 0.0
  %1396 = vmatpush1.msra.mxu0 0.0
  %1397 = vmatprep.subr.mxu0 0.0
  %1398 = vmatpush1.msra.mxu0 0.0
  %1399 = vmatprep.mubr.f32.mxu0 0.0
  %1400 = vmatmul.mubr.f32.gmra.mrb[0].mxu0 %v1333
  %v1401 = vpop.f32.mrb[0].mxu0
  %v1402 = vadd.f32 0.0, %v1401
  %v1403 = vpop.f32.mrb[0].mxu0
  %1404 = vdwg.mxu0
  %v1405 = vadd.f32 %v180, %v1402
  %v1406 = vmul.f32 %v1405, 2.0
  %v1407 = vsel %vm33, %v1406, %v1405
  %v1408 = vxor.u32 %v1407, 2147483648
  %v1409 = vmul.f32 %v1408, 1.442695
  %v1410 = vpow.pop %v1409
  %v1411 = vadd.f32 %v1410, 1.0
  %v1412 = vrcp.pop %v1411
  %v1413 = vmul.f32 1.0, %v1412
  %v1414 = vmul.f32 %v1413, 2.0
  %v1415 = vsub.f32 %v1414, 1.0
  %v1416 = vsel %vm33, %v1415, %v1413
  %v1417 = vmul.f32 %v1416, %v1200
  %1419 = vrot.lane.b32.xlu0 %v1416, 64
  %v1420 = vpop.permute.xlu0 %1419
  %v1422 = vmul.f32 %v1416, %v1420
  %1424 = vrot.lane.b32.xlu0 %v1422, 32
  %v1425 = vpop.permute.xlu0 %1424
  %v1427 = vadd.f32 %v1417, %v1425
  %v1428 = vmul.f32 %v1427, 2.0
  %v1429 = vxor.u32 %v1428, 2147483648
  %v1430 = vmul.f32 %v1429, 1.442695
  %v1431 = vpow.pop %v1430
  %v1432 = vadd.f32 %v1431, 1.0
  %v1433 = vrcp.pop %v1432
  %v1434 = vmul.f32 1.0, %v1433
  %v1435 = vmul.f32 %v1434, 2.0
  %v1436 = vsub.f32 %v1435, 1.0
  %1438 = vrot.lane.b32.xlu0 %v1436, 64
  %v1439 = vpop.permute.xlu0 %1438
  %v1441 = vmul.f32 %v1416, %v1439
  %1443 = vrot.lane.b32.xlu0 %v1441, 32
  %v1444 = vpop.permute.xlu0 %1443
  %1447 = vrot.lane.b32.xlu0 %v1332, 64
  %v1448 = vpop.permute.xlu0 %1447
  %v1450 = vsel %vm193, %v1444, %v1448
  %v1452 = vsel %vm315, %v1450, 0
  %1454 = vmatprep.subr.mxu0 0.0
  %1455 = vmatpush1.msra.mxu0 %v39
  %1456 = vmatprep.subr.mxu0 0.0
  %1457 = vmatpush1.msra.mxu0 %v40
  %1458 = vmatprep.subr.mxu0 0.0
  %1459 = vmatpush1.msra.mxu0 %v41
  %1460 = vmatprep.subr.mxu0 0.0
  %1461 = vmatpush1.msra.mxu0 %v42
  %1462 = vmatprep.subr.mxu0 0.0
  %1463 = vmatpush1.msra.mxu0 %v43
  %1464 = vmatprep.subr.mxu0 0.0
  %1465 = vmatpush1.msra.mxu0 %v44
  %1466 = vmatprep.subr.mxu0 0.0
  %1467 = vmatpush1.msra.mxu0 %v45
  %1468 = vmatprep.subr.mxu0 0.0
  %1469 = vmatpush1.msra.mxu0 %v46
  %1470 = vmatprep.subr.mxu0 0.0
  %1471 = vmatpush1.msra.mxu0 0.0
  %1472 = vmatprep.subr.mxu0 0.0
  %1473 = vmatpush1.msra.mxu0 0.0
  %1474 = vmatprep.subr.mxu0 0.0
  %1475 = vmatpush1.msra.mxu0 0.0
  %1476 = vmatprep.subr.mxu0 0.0
  %1477 = vmatpush1.msra.mxu0 0.0
  %1478 = vmatprep.subr.mxu0 0.0
  %1479 = vmatpush1.msra.mxu0 0.0
  %1480 = vmatprep.subr.mxu0 0.0
  %1481 = vmatpush1.msra.mxu0 0.0
  %1482 = vmatprep.subr.mxu0 0.0
  %1483 = vmatpush1.msra.mxu0 0.0
  %1484 = vmatprep.subr.mxu0 0.0
  %1485 = vmatpush1.msra.mxu0 0.0
  %1486 = vmatprep.subr.mxu0 0.0
  %1487 = vmatpush1.msra.mxu0 0.0
  %1488 = vmatprep.subr.mxu0 0.0
  %1489 = vmatpush1.msra.mxu0 0.0
  %1490 = vmatprep.subr.mxu0 0.0
  %1491 = vmatpush1.msra.mxu0 0.0
  %1492 = vmatprep.subr.mxu0 0.0
  %1493 = vmatpush1.msra.mxu0 0.0
  %1494 = vmatprep.subr.mxu0 0.0
  %1495 = vmatpush1.msra.mxu0 0.0
  %1496 = vmatprep.subr.mxu0 0.0
  %1497 = vmatpush1.msra.mxu0 0.0
  %1498 = vmatprep.subr.mxu0 0.0
  %1499 = vmatpush1.msra.mxu0 0.0
  %1500 = vmatprep.subr.mxu0 0.0
  %1501 = vmatpush1.msra.mxu0 0.0
  %1502 = vmatprep.subr.mxu0 0.0
  %1503 = vmatpush1.msra.mxu0 0.0
  %1504 = vmatprep.subr.mxu0 0.0
  %1505 = vmatpush1.msra.mxu0 0.0
  %1506 = vmatprep.subr.mxu0 0.0
  %1507 = vmatpush1.msra.mxu0 0.0
  %1508 = vmatprep.subr.mxu0 0.0
  %1509 = vmatpush1.msra.mxu0 0.0
  %1510 = vmatprep.subr.mxu0 0.0
  %1511 = vmatpush1.msra.mxu0 0.0
  %1512 = vmatprep.subr.mxu0 0.0
  %1513 = vmatpush1.msra.mxu0 0.0
  %1514 = vmatprep.subr.mxu0 0.0
  %1515 = vmatpush1.msra.mxu0 0.0
  %1516 = vmatprep.subr.mxu0 0.0
  %1517 = vmatpush1.msra.mxu0 0.0
  %1518 = vmatprep.mubr.f32.mxu0 0.0
  %1519 = vmatmul.mubr.f32.gmra.mrb[0].mxu0 %v1452
  %v1520 = vpop.f32.mrb[0].mxu0
  %v1521 = vadd.f32 %v313, %v1520
  %v1522 = vpop.f32.mrb[0].mxu0
  %1523 = vdwg.mxu0
  %v1524 = vmul.f32 %v1521, 2.0
  %v1525 = vsel %vm33, %v1524, %v1521
  %v1526 = vxor.u32 %v1525, 2147483648
  %v1527 = vmul.f32 %v1526, 1.442695
  %v1528 = vpow.pop %v1527
  %v1529 = vadd.f32 %v1528, 1.0
  %v1530 = vrcp.pop %v1529
  %v1531 = vmul.f32 1.0, %v1530
  %v1532 = vmul.f32 %v1531, 2.0
  %v1533 = vsub.f32 %v1532, 1.0
  %v1534 = vsel %vm33, %v1533, %v1531
  %v1535 = vmul.f32 %v1534, %v1318
  %1537 = vrot.lane.b32.xlu0 %v1534, 64
  %v1538 = vpop.permute.xlu0 %1537
  %v1540 = vmul.f32 %v1534, %v1538
  %1542 = vrot.lane.b32.xlu0 %v1540, 32
  %v1543 = vpop.permute.xlu0 %1542
  %v1545 = vadd.f32 %v1535, %v1543
  %v1546 = vmul.f32 %v1545, 2.0
  %v1547 = vxor.u32 %v1546, 2147483648
  %v1548 = vmul.f32 %v1547, 1.442695
  %v1549 = vpow.pop %v1548
  %v1550 = vadd.f32 %v1549, 1.0
  %v1551 = vrcp.pop %v1550
  %v1552 = vmul.f32 1.0, %v1551
  %v1553 = vmul.f32 %v1552, 2.0
  %v1554 = vsub.f32 %v1553, 1.0
  %1556 = vrot.lane.b32.xlu0 %v1554, 64
  %v1557 = vpop.permute.xlu0 %1556
  %v1559 = vmul.f32 %v1534, %v1557
  %v1560 = vsel %vm193, %v1444, 0
  %1562 = vmatprep.subr.mxu0 0.0
  %1563 = vmatpush1.msra.mxu0 %v34
  %1564 = vmatprep.subr.mxu0 0.0
  %1565 = vmatpush1.msra.mxu0 %v35
  %1566 = vmatprep.subr.mxu0 0.0
  %1567 = vmatpush1.msra.mxu0 %v36
  %1568 = vmatprep.subr.mxu0 0.0
  %1569 = vmatpush1.msra.mxu0 %v37
  %1570 = vmatprep.subr.mxu0 0.0
  %1571 = vmatpush1.msra.mxu0 0.0
  %1572 = vmatprep.subr.mxu0 0.0
  %1573 = vmatpush1.msra.mxu0 0.0
  %1574 = vmatprep.subr.mxu0 0.0
  %1575 = vmatpush1.msra.mxu0 0.0
  %1576 = vmatprep.subr.mxu0 0.0
  %1577 = vmatpush1.msra.mxu0 0.0
  %1578 = vmatprep.subr.mxu0 0.0
  %1579 = vmatpush1.msra.mxu0 0.0
  %1580 = vmatprep.subr.mxu0 0.0
  %1581 = vmatpush1.msra.mxu0 0.0
  %1582 = vmatprep.subr.mxu0 0.0
  %1583 = vmatpush1.msra.mxu0 0.0
  %1584 = vmatprep.subr.mxu0 0.0
  %1585 = vmatpush1.msra.mxu0 0.0
  %1586 = vmatprep.subr.mxu0 0.0
  %1587 = vmatpush1.msra.mxu0 0.0
  %1588 = vmatprep.subr.mxu0 0.0
  %1589 = vmatpush1.msra.mxu0 0.0
  %1590 = vmatprep.subr.mxu0 0.0
  %1591 = vmatpush1.msra.mxu0 0.0
  %1592 = vmatprep.subr.mxu0 0.0
  %1593 = vmatpush1.msra.mxu0 0.0
  %1594 = vmatprep.subr.mxu0 0.0
  %1595 = vmatpush1.msra.mxu0 0.0
  %1596 = vmatprep.subr.mxu0 0.0
  %1597 = vmatpush1.msra.mxu0 0.0
  %1598 = vmatprep.subr.mxu0 0.0
  %1599 = vmatpush1.msra.mxu0 0.0
  %1600 = vmatprep.subr.mxu0 0.0
  %1601 = vmatpush1.msra.mxu0 0.0
  %1602 = vmatprep.subr.mxu0 0.0
  %1603 = vmatpush1.msra.mxu0 0.0
  %1604 = vmatprep.subr.mxu0 0.0
  %1605 = vmatpush1.msra.mxu0 0.0
  %1606 = vmatprep.subr.mxu0 0.0
  %1607 = vmatpush1.msra.mxu0 0.0
  %1608 = vmatprep.subr.mxu0 0.0
  %1609 = vmatpush1.msra.mxu0 0.0
  %1610 = vmatprep.subr.mxu0 0.0
  %1611 = vmatpush1.msra.mxu0 0.0
  %1612 = vmatprep.subr.mxu0 0.0
  %1613 = vmatpush1.msra.mxu0 0.0
  %1614 = vmatprep.subr.mxu0 0.0
  %1615 = vmatpush1.msra.mxu0 0.0
  %1616 = vmatprep.subr.mxu0 0.0
  %1617 = vmatpush1.msra.mxu0 0.0
  %1618 = vmatprep.subr.mxu0 0.0
  %1619 = vmatpush1.msra.mxu0 0.0
  %1620 = vmatprep.subr.mxu0 0.0
  %1621 = vmatpush1.msra.mxu0 0.0
  %1622 = vmatprep.subr.mxu0 0.0
  %1623 = vmatpush1.msra.mxu0 0.0
  %1624 = vmatprep.subr.mxu0 0.0
  %1625 = vmatpush1.msra.mxu0 0.0
  %1626 = vmatprep.mubr.f32.mxu0 0.0
  %1627 = vmatmul.mubr.f32.gmra.mrb[0].mxu0 %v1560
  %v1628 = vpop.f32.mrb[0].mxu0
  %v1629 = vadd.f32 0.0, %v1628
  %v1630 = vpop.f32.mrb[0].mxu0
  %1631 = vdwg.mxu0
  %v1632 = vadd.f32 %v185, %v1629
  %v1633 = vmul.f32 %v1632, 2.0
  %v1634 = vsel %vm33, %v1633, %v1632
  %v1635 = vxor.u32 %v1634, 2147483648
  %v1636 = vmul.f32 %v1635, 1.442695
  %v1637 = vpow.pop %v1636
  %v1638 = vadd.f32 %v1637, 1.0
  %v1639 = vrcp.pop %v1638
  %v1640 = vmul.f32 1.0, %v1639
  %v1641 = vmul.f32 %v1640, 2.0
  %v1642 = vsub.f32 %v1641, 1.0
  %v1643 = vsel %vm33, %v1642, %v1640
  %v1644 = vmul.f32 %v1643, %v1427
  %1646 = vrot.lane.b32.xlu0 %v1643, 64
  %v1647 = vpop.permute.xlu0 %1646
  %v1649 = vmul.f32 %v1643, %v1647
  %1651 = vrot.lane.b32.xlu0 %v1649, 32
  %v1652 = vpop.permute.xlu0 %1651
  %v1654 = vadd.f32 %v1644, %v1652
  %v1655 = vmul.f32 %v1654, 2.0
  %v1656 = vxor.u32 %v1655, 2147483648
  %v1657 = vmul.f32 %v1656, 1.442695
  %v1658 = vpow.pop %v1657
  %v1659 = vadd.f32 %v1658, 1.0
  %v1660 = vrcp.pop %v1659
  %v1661 = vmul.f32 1.0, %v1660
  %v1662 = vmul.f32 %v1661, 2.0
  %v1663 = vsub.f32 %v1662, 1.0
  %1665 = vrot.lane.b32.xlu0 %v1663, 64
  %v1666 = vpop.permute.xlu0 %1665
  %v1668 = vmul.f32 %v1643, %v1666
  %1670 = vrot.lane.b32.xlu0 %v1668, 32
  %v1671 = vpop.permute.xlu0 %1670
  %1674 = vrot.lane.b32.xlu0 %v1559, 64
  %v1675 = vpop.permute.xlu0 %1674
  %v1677 = vsel %vm193, %v1671, %v1675
  %v1679 = vsel %vm315, %v1677, 0
  %1681 = vmatprep.subr.mxu0 0.0
  %1682 = vmatpush1.msra.mxu0 %v39
  %1683 = vmatprep.subr.mxu0 0.0
  %1684 = vmatpush1.msra.mxu0 %v40
  %1685 = vmatprep.subr.mxu0 0.0
  %1686 = vmatpush1.msra.mxu0 %v41
  %1687 = vmatprep.subr.mxu0 0.0
  %1688 = vmatpush1.msra.mxu0 %v42
  %1689 = vmatprep.subr.mxu0 0.0
  %1690 = vmatpush1.msra.mxu0 %v43
  %1691 = vmatprep.subr.mxu0 0.0
  %1692 = vmatpush1.msra.mxu0 %v44
  %1693 = vmatprep.subr.mxu0 0.0
  %1694 = vmatpush1.msra.mxu0 %v45
  %1695 = vmatprep.subr.mxu0 0.0
  %1696 = vmatpush1.msra.mxu0 %v46
  %1697 = vmatprep.subr.mxu0 0.0
  %1698 = vmatpush1.msra.mxu0 0.0
  %1699 = vmatprep.subr.mxu0 0.0
  %1700 = vmatpush1.msra.mxu0 0.0
  %1701 = vmatprep.subr.mxu0 0.0
  %1702 = vmatpush1.msra.mxu0 0.0
  %1703 = vmatprep.subr.mxu0 0.0
  %1704 = vmatpush1.msra.mxu0 0.0
  %1705 = vmatprep.subr.mxu0 0.0
  %1706 = vmatpush1.msra.mxu0 0.0
  %1707 = vmatprep.subr.mxu0 0.0
  %1708 = vmatpush1.msra.mxu0 0.0
  %1709 = vmatprep.subr.mxu0 0.0
  %1710 = vmatpush1.msra.mxu0 0.0
  %1711 = vmatprep.subr.mxu0 0.0
  %1712 = vmatpush1.msra.mxu0 0.0
  %1713 = vmatprep.subr.mxu0 0.0
  %1714 = vmatpush1.msra.mxu0 0.0
  %1715 = vmatprep.subr.mxu0 0.0
  %1716 = vmatpush1.msra.mxu0 0.0
  %1717 = vmatprep.subr.mxu0 0.0
  %1718 = vmatpush1.msra.mxu0 0.0
  %1719 = vmatprep.subr.mxu0 0.0
  %1720 = vmatpush1.msra.mxu0 0.0
  %1721 = vmatprep.subr.mxu0 0.0
  %1722 = vmatpush1.msra.mxu0 0.0
  %1723 = vmatprep.subr.mxu0 0.0
  %1724 = vmatpush1.msra.mxu0 0.0
  %1725 = vmatprep.subr.mxu0 0.0
  %1726 = vmatpush1.msra.mxu0 0.0
  %1727 = vmatprep.subr.mxu0 0.0
  %1728 = vmatpush1.msra.mxu0 0.0
  %1729 = vmatprep.subr.mxu0 0.0
  %1730 = vmatpush1.msra.mxu0 0.0
  %1731 = vmatprep.subr.mxu0 0.0
  %1732 = vmatpush1.msra.mxu0 0.0
  %1733 = vmatprep.subr.mxu0 0.0
  %1734 = vmatpush1.msra.mxu0 0.0
  %1735 = vmatprep.subr.mxu0 0.0
  %1736 = vmatpush1.msra.mxu0 0.0
  %1737 = vmatprep.subr.mxu0 0.0
  %1738 = vmatpush1.msra.mxu0 0.0
  %1739 = vmatprep.subr.mxu0 0.0
  %1740 = vmatpush1.msra.mxu0 0.0
  %1741 = vmatprep.subr.mxu0 0.0
  %1742 = vmatpush1.msra.mxu0 0.0
  %1743 = vmatprep.subr.mxu0 0.0
  %1744 = vmatpush1.msra.mxu0 0.0
  %1745 = vmatprep.mubr.f32.mxu0 0.0
  %1746 = vmatmul.mubr.f32.gmra.mrb[0].mxu0 %v1679
  %v1747 = vpop.f32.mrb[0].mxu0
  %v1748 = vadd.f32 %v313, %v1747
  %v1749 = vpop.f32.mrb[0].mxu0
  %1750 = vdwg.mxu0
  %v1751 = vmul.f32 %v1748, 2.0
  %v1752 = vsel %vm33, %v1751, %v1748
  %v1753 = vxor.u32 %v1752, 2147483648
  %v1754 = vmul.f32 %v1753, 1.442695
  %v1755 = vpow.pop %v1754
  %v1756 = vadd.f32 %v1755, 1.0
  %v1757 = vrcp.pop %v1756
  %v1758 = vmul.f32 1.0, %v1757
  %v1759 = vmul.f32 %v1758, 2.0
  %v1760 = vsub.f32 %v1759, 1.0
  %v1761 = vsel %vm33, %v1760, %v1758
  %v1762 = vmul.f32 %v1761, %v1545
  %1764 = vrot.lane.b32.xlu0 %v1761, 64
  %v1765 = vpop.permute.xlu0 %1764
  %v1767 = vmul.f32 %v1761, %v1765
  %1769 = vrot.lane.b32.xlu0 %v1767, 32
  %v1770 = vpop.permute.xlu0 %1769
  %v1772 = vadd.f32 %v1762, %v1770
  %v1773 = vmul.f32 %v1772, 2.0
  %v1774 = vxor.u32 %v1773, 2147483648
  %v1775 = vmul.f32 %v1774, 1.442695
  %v1776 = vpow.pop %v1775
  %v1777 = vadd.f32 %v1776, 1.0
  %v1778 = vrcp.pop %v1777
  %v1779 = vmul.f32 1.0, %v1778
  %v1780 = vmul.f32 %v1779, 2.0
  %v1781 = vsub.f32 %v1780, 1.0
  %1783 = vrot.lane.b32.xlu0 %v1781, 64
  %v1784 = vpop.permute.xlu0 %1783
  %v1786 = vmul.f32 %v1761, %v1784
  %v1787 = vsel %vm193, %v1671, 0
  %1789 = vmatprep.subr.mxu0 0.0
  %1790 = vmatpush1.msra.mxu0 %v34
  %1791 = vmatprep.subr.mxu0 0.0
  %1792 = vmatpush1.msra.mxu0 %v35
  %1793 = vmatprep.subr.mxu0 0.0
  %1794 = vmatpush1.msra.mxu0 %v36
  %1795 = vmatprep.subr.mxu0 0.0
  %1796 = vmatpush1.msra.mxu0 %v37
  %1797 = vmatprep.subr.mxu0 0.0
  %1798 = vmatpush1.msra.mxu0 0.0
  %1799 = vmatprep.subr.mxu0 0.0
  %1800 = vmatpush1.msra.mxu0 0.0
  %1801 = vmatprep.subr.mxu0 0.0
  %1802 = vmatpush1.msra.mxu0 0.0
  %1803 = vmatprep.subr.mxu0 0.0
  %1804 = vmatpush1.msra.mxu0 0.0
  %1805 = vmatprep.subr.mxu0 0.0
  %1806 = vmatpush1.msra.mxu0 0.0
  %1807 = vmatprep.subr.mxu0 0.0
  %1808 = vmatpush1.msra.mxu0 0.0
  %1809 = vmatprep.subr.mxu0 0.0
  %1810 = vmatpush1.msra.mxu0 0.0
  %1811 = vmatprep.subr.mxu0 0.0
  %1812 = vmatpush1.msra.mxu0 0.0
  %1813 = vmatprep.subr.mxu0 0.0
  %1814 = vmatpush1.msra.mxu0 0.0
  %1815 = vmatprep.subr.mxu0 0.0
  %1816 = vmatpush1.msra.mxu0 0.0
  %1817 = vmatprep.subr.mxu0 0.0
  %1818 = vmatpush1.msra.mxu0 0.0
  %1819 = vmatprep.subr.mxu0 0.0
  %1820 = vmatpush1.msra.mxu0 0.0
  %1821 = vmatprep.subr.mxu0 0.0
  %1822 = vmatpush1.msra.mxu0 0.0
  %1823 = vmatprep.subr.mxu0 0.0
  %1824 = vmatpush1.msra.mxu0 0.0
  %1825 = vmatprep.subr.mxu0 0.0
  %1826 = vmatpush1.msra.mxu0 0.0
  %1827 = vmatprep.subr.mxu0 0.0
  %1828 = vmatpush1.msra.mxu0 0.0
  %1829 = vmatprep.subr.mxu0 0.0
  %1830 = vmatpush1.msra.mxu0 0.0
  %1831 = vmatprep.subr.mxu0 0.0
  %1832 = vmatpush1.msra.mxu0 0.0
  %1833 = vmatprep.subr.mxu0 0.0
  %1834 = vmatpush1.msra.mxu0 0.0
  %1835 = vmatprep.subr.mxu0 0.0
  %1836 = vmatpush1.msra.mxu0 0.0
  %1837 = vmatprep.subr.mxu0 0.0
  %1838 = vmatpush1.msra.mxu0 0.0
  %1839 = vmatprep.subr.mxu0 0.0
  %1840 = vmatpush1.msra.mxu0 0.0
  %1841 = vmatprep.subr.mxu0 0.0
  %1842 = vmatpush1.msra.mxu0 0.0
  %1843 = vmatprep.subr.mxu0 0.0
  %1844 = vmatpush1.msra.mxu0 0.0
  %1845 = vmatprep.subr.mxu0 0.0
  %1846 = vmatpush1.msra.mxu0 0.0
  %1847 = vmatprep.subr.mxu0 0.0
  %1848 = vmatpush1.msra.mxu0 0.0
  %1849 = vmatprep.subr.mxu0 0.0
  %1850 = vmatpush1.msra.mxu0 0.0
  %1851 = vmatprep.subr.mxu0 0.0
  %1852 = vmatpush1.msra.mxu0 0.0
  %1853 = vmatprep.mubr.f32.mxu0 0.0
  %1854 = vmatmul.mubr.f32.gmra.mrb[0].mxu0 %v1787
  %v1855 = vpop.f32.mrb[0].mxu0
  %v1856 = vadd.f32 0.0, %v1855
  %v1857 = vpop.f32.mrb[0].mxu0
  %1858 = vdwg.mxu0
  %v1859 = vadd.f32 %v190, %v1856
  %v1860 = vmul.f32 %v1859, 2.0
  %v1861 = vsel %vm33, %v1860, %v1859
  %v1862 = vxor.u32 %v1861, 2147483648
  %v1863 = vmul.f32 %v1862, 1.442695
  %v1864 = vpow.pop %v1863
  %v1865 = vadd.f32 %v1864, 1.0
  %v1866 = vrcp.pop %v1865
  %v1867 = vmul.f32 1.0, %v1866
  %v1868 = vmul.f32 %v1867, 2.0
  %v1869 = vsub.f32 %v1868, 1.0
  %v1870 = vsel %vm33, %v1869, %v1867
  %v1871 = vmul.f32 %v1870, %v1654
  %1873 = vrot.lane.b32.xlu0 %v1870, 64
  %v1874 = vpop.permute.xlu0 %1873
  %v1876 = vmul.f32 %v1870, %v1874
  %1878 = vrot.lane.b32.xlu0 %v1876, 32
  %v1879 = vpop.permute.xlu0 %1878
  %v1881 = vadd.f32 %v1871, %v1879
  %v1882 = vmul.f32 %v1881, 2.0
  %v1883 = vxor.u32 %v1882, 2147483648
  %v1884 = vmul.f32 %v1883, 1.442695
  %v1885 = vpow.pop %v1884
  %v1886 = vadd.f32 %v1885, 1.0
  %v1887 = vrcp.pop %v1886
  %v1888 = vmul.f32 1.0, %v1887
  %v1889 = vmul.f32 %v1888, 2.0
  %v1890 = vsub.f32 %v1889, 1.0
  %1892 = vrot.lane.b32.xlu0 %v1890, 64
  %v1893 = vpop.permute.xlu0 %1892
  %v1895 = vmul.f32 %v1870, %v1893
  %1897 = vrot.lane.b32.xlu0 %v1895, 32
  %v1898 = vpop.permute.xlu0 %1897
  %1901 = vrot.lane.b32.xlu0 %v1786, 64
  %v1902 = vpop.permute.xlu0 %1901
  %v1904 = vsel %vm193, %v1898, %v1902
  %v1906 = vsel %vm315, %v1904, 0
  %1908 = vmatprep.subr.mxu0 0.0
  %1909 = vmatpush1.msra.mxu0 %v39
  %1910 = vmatprep.subr.mxu0 0.0
  %1911 = vmatpush1.msra.mxu0 %v40
  %1912 = vmatprep.subr.mxu0 0.0
  %1913 = vmatpush1.msra.mxu0 %v41
  %1914 = vmatprep.subr.mxu0 0.0
  %1915 = vmatpush1.msra.mxu0 %v42
  %1916 = vmatprep.subr.mxu0 0.0
  %1917 = vmatpush1.msra.mxu0 %v43
  %1918 = vmatprep.subr.mxu0 0.0
  %1919 = vmatpush1.msra.mxu0 %v44
  %1920 = vmatprep.subr.mxu0 0.0
  %1921 = vmatpush1.msra.mxu0 %v45
  %1922 = vmatprep.subr.mxu0 0.0
  %1923 = vmatpush1.msra.mxu0 %v46
  %1924 = vmatprep.subr.mxu0 0.0
  %1925 = vmatpush1.msra.mxu0 0.0
  %1926 = vmatprep.subr.mxu0 0.0
  %1927 = vmatpush1.msra.mxu0 0.0
  %1928 = vmatprep.subr.mxu0 0.0
  %1929 = vmatpush1.msra.mxu0 0.0
  %1930 = vmatprep.subr.mxu0 0.0
  %1931 = vmatpush1.msra.mxu0 0.0
  %1932 = vmatprep.subr.mxu0 0.0
  %1933 = vmatpush1.msra.mxu0 0.0
  %1934 = vmatprep.subr.mxu0 0.0
  %1935 = vmatpush1.msra.mxu0 0.0
  %1936 = vmatprep.subr.mxu0 0.0
  %1937 = vmatpush1.msra.mxu0 0.0
  %1938 = vmatprep.subr.mxu0 0.0
  %1939 = vmatpush1.msra.mxu0 0.0
  %1940 = vmatprep.subr.mxu0 0.0
  %1941 = vmatpush1.msra.mxu0 0.0
  %1942 = vmatprep.subr.mxu0 0.0
  %1943 = vmatpush1.msra.mxu0 0.0
  %1944 = vmatprep.subr.mxu0 0.0
  %1945 = vmatpush1.msra.mxu0 0.0
  %1946 = vmatprep.subr.mxu0 0.0
  %1947 = vmatpush1.msra.mxu0 0.0
  %1948 = vmatprep.subr.mxu0 0.0
  %1949 = vmatpush1.msra.mxu0 0.0
  %1950 = vmatprep.subr.mxu0 0.0
  %1951 = vmatpush1.msra.mxu0 0.0
  %1952 = vmatprep.subr.mxu0 0.0
  %1953 = vmatpush1.msra.mxu0 0.0
  %1954 = vmatprep.subr.mxu0 0.0
  %1955 = vmatpush1.msra.mxu0 0.0
  %1956 = vmatprep.subr.mxu0 0.0
  %1957 = vmatpush1.msra.mxu0 0.0
  %1958 = vmatprep.subr.mxu0 0.0
  %1959 = vmatpush1.msra.mxu0 0.0
  %1960 = vmatprep.subr.mxu0 0.0
  %1961 = vmatpush1.msra.mxu0 0.0
  %1962 = vmatprep.subr.mxu0 0.0
  %1963 = vmatpush1.msra.mxu0 0.0
  %1964 = vmatprep.subr.mxu0 0.0
  %1965 = vmatpush1.msra.mxu0 0.0
  %1966 = vmatprep.subr.mxu0 0.0
  %1967 = vmatpush1.msra.mxu0 0.0
  %1968 = vmatprep.subr.mxu0 0.0
  %1969 = vmatpush1.msra.mxu0 0.0
  %1970 = vmatprep.subr.mxu0 0.0
  %1971 = vmatpush1.msra.mxu0 0.0
  %1972 = vmatprep.mubr.f32.mxu0 0.0
  %1973 = vmatmul.mubr.f32.gmra.mrb[0].mxu0 %v1906
  %v1974 = vpop.f32.mrb[0].mxu0
  %v1975 = vadd.f32 %v313, %v1974
  %v1976 = vpop.f32.mrb[0].mxu0
  %1977 = vdwg.mxu0
  %v1978 = vmul.f32 %v1975, 2.0
  %v1979 = vsel %vm33, %v1978, %v1975
  %v1980 = vxor.u32 %v1979, 2147483648
  %v1981 = vmul.f32 %v1980, 1.442695
  %v1982 = vpow.pop %v1981
  %v1983 = vadd.f32 %v1982, 1.0
  %v1984 = vrcp.pop %v1983
  %v1985 = vmul.f32 1.0, %v1984
  %v1986 = vmul.f32 %v1985, 2.0
  %v1987 = vsub.f32 %v1986, 1.0
  %v1988 = vsel %vm33, %v1987, %v1985
  %v1989 = vmul.f32 %v1988, %v1772
  %1991 = vrot.lane.b32.xlu0 %v1988, 64
  %v1992 = vpop.permute.xlu0 %1991
  %v1994 = vmul.f32 %v1988, %v1992
  %1996 = vrot.lane.b32.xlu0 %v1994, 32
  %v1997 = vpop.permute.xlu0 %1996
  %v1999 = vadd.f32 %v1989, %v1997
  %v2000 = vmul.f32 %v1999, 2.0
  %v2001 = vxor.u32 %v2000, 2147483648
  %v2002 = vmul.f32 %v2001, 1.442695
  %v2003 = vpow.pop %v2002
  %v2004 = vadd.f32 %v2003, 1.0
  %v2005 = vrcp.pop %v2004
  %v2006 = vmul.f32 1.0, %v2005
  %v2007 = vmul.f32 %v2006, 2.0
  %v2008 = vsub.f32 %v2007, 1.0
  %2010 = vrot.lane.b32.xlu0 %v2008, 64
  %v2011 = vpop.permute.xlu0 %2010
  %v2013 = vmul.f32 %v1988, %v2011
  %v2014 = vld [vmem:[%s6] sm:$0xff]
  %v2015 = vld [vmem:[%s6 + $0x8] sm:$0xff]
  %v2016 = vld [vmem:[%s6 + $0x10] sm:$0xff]
  %v2017 = vld [vmem:[%s6 + $0x18] sm:$0xff]
  %v2018 = vld [vmem:[%s7] sm:$0x1]
  %v2020 = vlaneseq
  %v2021 = vshrl.u32 %v2020, 7
  %v2022 = vsub.s32 0, %v2021
  %v2023 = vrot.slane %v2018, %v2022
  %2026 = vrot.lane.b32.xlu0 %v2013, 32
  %v2027 = vpop.permute.xlu0 %2026
  %v2028 = vsel %vm193, %v2027, 0
  %2030 = vmatprep.subr.mxu0 0.0
  %2031 = vmatpush1.msra.mxu0 %v2014
  %2032 = vmatprep.subr.mxu0 0.0
  %2033 = vmatpush1.msra.mxu0 %v2015
  %2034 = vmatprep.subr.mxu0 0.0
  %2035 = vmatpush1.msra.mxu0 %v2016
  %2036 = vmatprep.subr.mxu0 0.0
  %2037 = vmatpush1.msra.mxu0 %v2017
  %2038 = vmatprep.subr.mxu0 0.0
  %2039 = vmatpush1.msra.mxu0 0.0
  %2040 = vmatprep.subr.mxu0 0.0
  %2041 = vmatpush1.msra.mxu0 0.0
  %2042 = vmatprep.subr.mxu0 0.0
  %2043 = vmatpush1.msra.mxu0 0.0
  %2044 = vmatprep.subr.mxu0 0.0
  %2045 = vmatpush1.msra.mxu0 0.0
  %2046 = vmatprep.subr.mxu0 0.0
  %2047 = vmatpush1.msra.mxu0 0.0
  %2048 = vmatprep.subr.mxu0 0.0
  %2049 = vmatpush1.msra.mxu0 0.0
  %2050 = vmatprep.subr.mxu0 0.0
  %2051 = vmatpush1.msra.mxu0 0.0
  %2052 = vmatprep.subr.mxu0 0.0
  %2053 = vmatpush1.msra.mxu0 0.0
  %2054 = vmatprep.subr.mxu0 0.0
  %2055 = vmatpush1.msra.mxu0 0.0
  %2056 = vmatprep.subr.mxu0 0.0
  %2057 = vmatpush1.msra.mxu0 0.0
  %2058 = vmatprep.subr.mxu0 0.0
  %2059 = vmatpush1.msra.mxu0 0.0
  %2060 = vmatprep.subr.mxu0 0.0
  %2061 = vmatpush1.msra.mxu0 0.0
  %2062 = vmatprep.subr.mxu0 0.0
  %2063 = vmatpush1.msra.mxu0 0.0
  %2064 = vmatprep.subr.mxu0 0.0
  %2065 = vmatpush1.msra.mxu0 0.0
  %2066 = vmatprep.subr.mxu0 0.0
  %2067 = vmatpush1.msra.mxu0 0.0
  %2068 = vmatprep.subr.mxu0 0.0
  %2069 = vmatpush1.msra.mxu0 0.0
  %2070 = vmatprep.subr.mxu0 0.0
  %2071 = vmatpush1.msra.mxu0 0.0
  %2072 = vmatprep.subr.mxu0 0.0
  %2073 = vmatpush1.msra.mxu0 0.0
  %2074 = vmatprep.subr.mxu0 0.0
  %2075 = vmatpush1.msra.mxu0 0.0
  %2076 = vmatprep.subr.mxu0 0.0
  %2077 = vmatpush1.msra.mxu0 0.0
  %2078 = vmatprep.subr.mxu0 0.0
  %2079 = vmatpush1.msra.mxu0 0.0
  %2080 = vmatprep.subr.mxu0 0.0
  %2081 = vmatpush1.msra.mxu0 0.0
  %2082 = vmatprep.subr.mxu0 0.0
  %2083 = vmatpush1.msra.mxu0 0.0
  %2084 = vmatprep.subr.mxu0 0.0
  %2085 = vmatpush1.msra.mxu0 0.0
  %2086 = vmatprep.subr.mxu0 0.0
  %2087 = vmatpush1.msra.mxu0 0.0
  %2088 = vmatprep.subr.mxu0 0.0
  %2089 = vmatpush1.msra.mxu0 0.0
  %2090 = vmatprep.subr.mxu0 0.0
  %2091 = vmatpush1.msra.mxu0 0.0
  %2092 = vmatprep.subr.mxu0 0.0
  %2093 = vmatpush1.msra.mxu0 0.0
  %2094 = vmatprep.mubr.f32.mxu0 0.0
  %2095 = vmatmul.mubr.f32.gmra.mrb[0].mxu0 %v2028
  %v2096 = vpop.f32.mrb[0].mxu0
  %v2097 = vadd.f32 %v2023, %v2096
  %v2098 = vpop.f32.mrb[0].mxu0
  %2099 = vdwg.mxu0
  %vm2100 = vcmask 31744
  %2101 = vst.msk [vmem:[%s8] sm:$0xff] %vm2100, %v2097
  // Predicated region
  $region34: #{tpu_custom_call.1} parent=0 // pred_check
    _
  $region35: #{tpu_custom_call.1} parent=0 // pred_check_branch
    %2103 = sbr.rel (0) target = $region37
  $region36: #{tpu_custom_call.1} parent=0 // pred_region
    _
  $region37: #{tpu_custom_call.1} parent=0 // pred_fallthru
    _
  // Predicated region
  $region38: #{tpu_custom_call.1} parent=0 // pred_check
    _
  $region39: #{tpu_custom_call.1} parent=0 // pred_check_branch
    %2105 = sbr.rel (0) target = $region41
  $region40: #{tpu_custom_call.1} parent=0 // pred_region
    _
  $region41: #{tpu_custom_call.1} parent=0 // pred_fallthru
    _

</llo_original>
